<compile_context>
chip_gen: v7x
topology: tpu7x:2x2x1
jax: 0.10.0
libtpu: 0.0.40
codegen_flags: <defaults>
</compile_context>

<pallas_src>
import functools

import jax
import jax.numpy as jnp
from jax.experimental import pallas as pl
from jax.experimental.pallas import tpu as pltpu


# --------------------------- fused forward kernel -----------------------------
def _fused_kernel(num_layers, batch, *args):
    """Fused multi-layer LSTM + trend Linear.

    args (in order):
      x_ref                     : (T*B, In)  flattened input sequence
      per layer l in [0, L):    wx_ref (In_l, 4H), wh_ref (H, 4H), b_ref (1, 4H)
      tw_ref                    : (H, m)     trend weight (pre-transposed)
      tb_ref                    : (1, m)     trend bias
      out_ref                   : (T*B, m)   trend output (single store)
      hseq_sc                   : (T*B, H)   VMEM scratch for final-layer h_t
    """
    x_ref = args[0]
    layer_refs = args[1:1 + 3 * num_layers]
    tw_ref = args[1 + 3 * num_layers]
    tb_ref = args[2 + 3 * num_layers]
    out_ref = args[3 + 3 * num_layers]
    hseq_sc = args[4 + 3 * num_layers]

    TB = x_ref.shape[0]
    B = batch
    T = TB // B
    H, m = tw_ref.shape
    G = 4 * H

    # g-gate lanes [2H, 3H) use tanh; i/f/o lanes use sigmoid.
    # tanh(x) = 2*sigmoid(2x) - 1, so fold the "2x" into the loop-invariant
    # g-gate weight/bias columns once, run a single full-width sigmoid per
    # step, and fix the g lanes with one mul + add.
    lane = jax.lax.broadcasted_iota(jnp.int32, (1, G), 1)
    is_g = (lane >= 2 * H) & (lane < 3 * H)
    pre_scale = jnp.where(is_g, 2.0, 1.0).astype(jnp.float32)            # (1, G)
    post_mul = jnp.broadcast_to(
        jnp.where(is_g, 2.0, 1.0), (B, G)).astype(jnp.float32)           # hoisted
    post_add = jnp.broadcast_to(
        jnp.where(is_g, -1.0, 0.0), (B, G)).astype(jnp.float32)          # hoisted

    # Loop-invariant hoists: read each weight ref exactly once, pre-scale the
    # g columns (cost paid once, not per timestep).
    wxs = [layer_refs[3 * l][...] * pre_scale for l in range(num_layers)]
    whs = [layer_refs[3 * l + 1][...] * pre_scale for l in range(num_layers)]
    bs = [layer_refs[3 * l + 2][...] * pre_scale for l in range(num_layers)]  # (1, G)
    bs_bc = [jnp.broadcast_to(bs[l], (B, G)) for l in range(num_layers)]

    # Layer-0 input projection is independent of the recurrence: hoist it out
    # of the time loop as ONE (T*B, In) @ (In, 4H) matmul (+ bias).
    xproj0 = (
        jnp.dot(x_ref[...], wxs[0], preferred_element_type=jnp.float32) + bs[0]
    )  # (T*B, 4H)

    hs = [jnp.zeros((B, H), jnp.float32) for _ in range(num_layers)]
    cs = [jnp.zeros((B, H), jnp.float32) for _ in range(num_layers)]

    def lstm_cell(gates, l):
        sig = jax.nn.sigmoid(gates)          # single EUP pass over all 4H lanes
        act = sig * post_mul + post_add      # g lanes become 2*sigmoid(2x) - 1
        i_g = act[:, 0 * H:1 * H]
        f_g = act[:, 1 * H:2 * H]
        g_g = act[:, 2 * H:3 * H]
        o_g = act[:, 3 * H:4 * H]
        cs[l] = f_g * cs[l] + i_g * g_g
        hs[l] = o_g * jnp.tanh(cs[l])

    # Time loop fully unrolled (T is tiny & static): no grid-step overhead,
    # recurrent state stays in vregs across steps.
    # TODO(synk): for T in the hundreds switch to lax.fori_loop(..., unroll=4)
    #             writing hseq via pl.ds to bound vreg live ranges.
    for t in range(T):
        # layer 0: only the recurrent matmul remains on the critical path.
        gates0 = xproj0[t * B:(t + 1) * B] + jnp.dot(
            hs[0], whs[0], preferred_element_type=jnp.float32)
        lstm_cell(gates0, 0)
        # layers 1..L-1: input is the (fresh) hidden state of the layer below.
        for l in range(1, num_layers):
            gates = (
                jnp.dot(hs[l - 1], wxs[l], preferred_element_type=jnp.float32)
                + jnp.dot(hs[l], whs[l], preferred_element_type=jnp.float32)
                + bs_bc[l]
            )
            lstm_cell(gates, l)
        # 2D scratch write: no (T, B, H) tile padding, no later 3D->2D relayout.
        hseq_sc[t * B:(t + 1) * B, :] = hs[num_layers - 1]

    # Trend: single lane/sublane-dense (T*B, H) @ (H, m) matmul + one store.
    trend = (
        jnp.dot(hseq_sc[...], tw_ref[...], preferred_element_type=jnp.float32)
        + tb_ref[...]
    )
    out_ref[...] = trend.astype(out_ref.dtype)


def deepvarwt_fused_trend(x, lstm_layers, trend_w, trend_b):
    """x: (T, B, In); lstm_layers: list of {'wx','wh','b'}; returns (T, B, m)."""
    T, B, In = x.shape
    H, m = trend_w.shape
    num_layers = len(lstm_layers)

    # Present the input as a lane/sublane-dense (T*B, In) slab: the kernel
    # hoists the whole layer-0 input projection out of the time loop.
    x2d = x.reshape(T * B, In)

    operands = [x2d]
    in_specs = [pl.BlockSpec((T * B, In), lambda: (0, 0))]
    for lp in lstm_layers:
        operands += [lp["wx"], lp["wh"], lp["b"]]
        in_specs += [
            pl.BlockSpec(lp["wx"].shape, lambda: (0, 0)),
            pl.BlockSpec(lp["wh"].shape, lambda: (0, 0)),
            pl.BlockSpec(lp["b"].shape, lambda: (0, 0)),
        ]
    operands += [trend_w, trend_b]
    in_specs += [
        pl.BlockSpec((H, m), lambda: (0, 0)),
        pl.BlockSpec((1, m), lambda: (0, 0)),
    ]

    kernel = functools.partial(_fused_kernel, num_layers, B)
    trend2d = pl.pallas_call(
        kernel,
        out_shape=jax.ShapeDtypeStruct((T * B, m), jnp.float32),
        in_specs=in_specs,
        out_specs=pl.BlockSpec((T * B, m), lambda: (0, 0)),
        scratch_shapes=[pltpu.VMEM((T * B, H), jnp.float32)],
    )(*operands)
    return trend2d.reshape(T, B, m)


# ----------------------------- DeepVARwT wrapper ------------------------------
def init_deepvarwt_params(key, input_size, hidden_dim, num_layers, m, order):
    """Deterministic synthetic parameter init (shapes match the PyTorch module)."""
    params = {}
    lstm_layers = []
    for layer in range(num_layers):
        in_sz = input_size if layer == 0 else hidden_dim
        key, k1, k2, k3, k4 = jax.random.split(key, 5)
        scale = 1.0 / jnp.sqrt(hidden_dim)
        # stored pre-transposed: (in, 4H) and (H, 4H); PyTorch gate order i,f,g,o
        wx = jax.random.uniform(k1, (in_sz, 4 * hidden_dim), jnp.float32, -scale, scale)
        wh = jax.random.uniform(k2, (hidden_dim, 4 * hidden_dim), jnp.float32, -scale, scale)
        b_ih = jax.random.uniform(k3, (4 * hidden_dim,), jnp.float32, -scale, scale)
        b_hh = jax.random.uniform(k4, (4 * hidden_dim,), jnp.float32, -scale, scale)
        lstm_layers.append({"wx": wx, "wh": wh, "b": (b_ih + b_hh)[None, :]})
    params["lstm"] = lstm_layers

    key, k5, k6, k7, k8 = jax.random.split(key, 5)
    params["init_ar_parameters"] = jax.random.normal(k5, (m, m, order), jnp.float32)
    n_resid = int(m * (m + 1) / 2)
    params["init_residual_params"] = jax.random.normal(k6, (n_resid,), jnp.float32)
    scale = 1.0 / jnp.sqrt(hidden_dim)
    params["trend_w"] = jax.random.uniform(k7, (hidden_dim, m), jnp.float32, -scale, scale)
    params["trend_b"] = jax.random.uniform(k8, (1, m), jnp.float32, -scale, scale)
    return params


@jax.jit
def deepvarwt_forward(params, inputs):
    """inputs: (seq_len, batch, input_size) -> (var_coeffs, residual_params, trend)."""
    trend = deepvarwt_fused_trend(
        inputs, params["lstm"], params["trend_w"], params["trend_b"]
    )
    return params["init_ar_parameters"], params["init_residual_params"], trend


# ----------------------------- reference (pure JAX) ----------------------------
def _reference_forward(params, inputs):
    x = inputs
    for lp in params["lstm"]:
        T, B, _ = x.shape
        H = lp["wh"].shape[0]
        h = jnp.zeros((B, H), jnp.float32)
        c = jnp.zeros((B, H), jnp.float32)
        outs = []
        for t in range(T):
            gates = x[t] @ lp["wx"] + h @ lp["wh"] + lp["b"]
            i_g = jax.nn.sigmoid(gates[:, 0 * H:1 * H])
            f_g = jax.nn.sigmoid(gates[:, 1 * H:2 * H])
            g_g = jnp.tanh(gates[:, 2 * H:3 * H])
            o_g = jax.nn.sigmoid(gates[:, 3 * H:4 * H])
            c = f_g * c + i_g * g_g
            h = o_g * jnp.tanh(c)
            outs.append(h)
        x = jnp.stack(outs, axis=0)
    trend = x @ params["trend_w"] + params["trend_b"]
    return params["init_ar_parameters"], params["init_residual_params"], trend


if __name__ == "__main__":
    # Small shapes consistent with the module's forward:
    input_size, hidden_dim, num_layers = 4, 32, 2
    seq_len, batch = 8, 2
    m, order = 3, 2

    key = jax.random.PRNGKey(0)
    key, pkey, xkey = jax.random.split(key, 3)
    params = init_deepvarwt_params(pkey, input_size, hidden_dim, num_layers, m, order)
    inputs = jax.random.normal(xkey, (seq_len, batch, input_size), jnp.float32)

    var_coeffs, residual_params, trend = deepvarwt_forward(params, inputs)
    jax.block_until_ready(trend)

    # Sanity-check against pure-JAX reference.
    ref_vc, ref_rp, ref_trend = _reference_forward(params, inputs)
    assert var_coeffs.shape == (m, m, order)
    assert residual_params.shape == (int(m * (m + 1) / 2),)
    assert trend.shape == (seq_len, batch, m)
    assert jnp.allclose(trend, ref_trend, rtol=1e-4, atol=1e-4)
    assert jnp.allclose(var_coeffs, ref_vc)
    assert jnp.allclose(residual_params, ref_rp)

    print("KERNEL_OK")
</pallas_src>

<mosaic_0001>
module attributes {stable_mosaic.version = 11 : i64} {
  func.func @_fused_kernel(%arg0: memref<16x4xf32, #tpu.memory_space<vmem>>, %arg1: memref<4x128xf32, #tpu.memory_space<vmem>>, %arg2: memref<32x128xf32, #tpu.memory_space<vmem>>, %arg3: memref<1x128xf32, #tpu.memory_space<vmem>>, %arg4: memref<32x128xf32, #tpu.memory_space<vmem>>, %arg5: memref<32x128xf32, #tpu.memory_space<vmem>>, %arg6: memref<1x128xf32, #tpu.memory_space<vmem>>, %arg7: memref<32x3xf32, #tpu.memory_space<vmem>>, %arg8: memref<1x3xf32, #tpu.memory_space<vmem>>, %arg9: memref<16x3xf32, #tpu.memory_space<vmem>>, %arg10: memref<16x32xf32, #tpu.memory_space<vmem>>) attributes {dimension_semantics = [], scalar_prefetch = 0 : i64, scratch_operands = 1 : i64, tpu.core_type = #tpu.core_type<tc>} {
    %0 = tpu.iota {dimensions = array<i32: 1>} : vector<1x128xi32>
    %c64_i32 = arith.constant 64 : i32
    %1 = vector.broadcast %c64_i32 : i32 to vector<1x128xi32>
    %2 = arith.cmpi sge, %0, %1 : vector<1x128xi32>
    %c96_i32 = arith.constant 96 : i32
    %3 = vector.broadcast %c96_i32 : i32 to vector<1x128xi32>
    %4 = arith.cmpi slt, %0, %3 : vector<1x128xi32>
    %5 = arith.andi %2, %4 : vector<1x128xi1>
    %cst = arith.constant 2.000000e+00 : f32
    %cst_0 = arith.constant 1.000000e+00 : f32
    %6 = vector.broadcast %cst : f32 to vector<1x128xf32>
    %7 = vector.broadcast %cst_0 : f32 to vector<1x128xf32>
    %8 = arith.select %5, %6, %7 : vector<1x128xi1>, vector<1x128xf32>
    %cst_1 = arith.constant 2.000000e+00 : f32
    %cst_2 = arith.constant 1.000000e+00 : f32
    %9 = vector.broadcast %cst_1 : f32 to vector<1x128xf32>
    %10 = vector.broadcast %cst_2 : f32 to vector<1x128xf32>
    %11 = arith.select %5, %9, %10 : vector<1x128xi1>, vector<1x128xf32>
    %12 = vector.shape_cast %11 : vector<1x128xf32> to vector<1x128xf32>
    %13 = vector.broadcast %12 : vector<1x128xf32> to vector<2x128xf32>
    %cst_3 = arith.constant -1.000000e+00 : f32
    %cst_4 = arith.constant 0.000000e+00 : f32
    %14 = vector.broadcast %cst_3 : f32 to vector<1x128xf32>
    %15 = vector.broadcast %cst_4 : f32 to vector<1x128xf32>
    %16 = arith.select %5, %14, %15 : vector<1x128xi1>, vector<1x128xf32>
    %17 = vector.shape_cast %16 : vector<1x128xf32> to vector<1x128xf32>
    %18 = vector.broadcast %17 : vector<1x128xf32> to vector<2x128xf32>
    %c0 = arith.constant 0 : index
    %c0_5 = arith.constant 0 : index
    %19 = vector.load %arg1[%c0, %c0_5] : memref<4x128xf32, #tpu.memory_space<vmem>>, vector<4x128xf32>
    %20 = vector.broadcast %8 : vector<1x128xf32> to vector<4x128xf32>
    %21 = arith.mulf %19, %20 : vector<4x128xf32>
    %c0_6 = arith.constant 0 : index
    %c0_7 = arith.constant 0 : index
    %22 = vector.load %arg4[%c0_6, %c0_7] : memref<32x128xf32, #tpu.memory_space<vmem>>, vector<32x128xf32>
    %23 = vector.broadcast %8 : vector<1x128xf32> to vector<32x128xf32>
    %24 = arith.mulf %22, %23 : vector<32x128xf32>
    %c0_8 = arith.constant 0 : index
    %c0_9 = arith.constant 0 : index
    %25 = vector.load %arg2[%c0_8, %c0_9] : memref<32x128xf32, #tpu.memory_space<vmem>>, vector<32x128xf32>
    %26 = vector.broadcast %8 : vector<1x128xf32> to vector<32x128xf32>
    %27 = arith.mulf %25, %26 : vector<32x128xf32>
    %c0_10 = arith.constant 0 : index
    %c0_11 = arith.constant 0 : index
    %28 = vector.load %arg5[%c0_10, %c0_11] : memref<32x128xf32, #tpu.memory_space<vmem>>, vector<32x128xf32>
    %29 = vector.broadcast %8 : vector<1x128xf32> to vector<32x128xf32>
    %30 = arith.mulf %28, %29 : vector<32x128xf32>
    %c0_12 = arith.constant 0 : index
    %c0_13 = arith.constant 0 : index
    %31 = vector.load %arg3[%c0_12, %c0_13] : memref<1x128xf32, #tpu.memory_space<vmem>>, vector<1x128xf32>
    %32 = arith.mulf %31, %8 : vector<1x128xf32>
    %c0_14 = arith.constant 0 : index
    %c0_15 = arith.constant 0 : index
    %33 = vector.load %arg6[%c0_14, %c0_15] : memref<1x128xf32, #tpu.memory_space<vmem>>, vector<1x128xf32>
    %34 = arith.mulf %33, %8 : vector<1x128xf32>
    %35 = vector.shape_cast %34 : vector<1x128xf32> to vector<1x128xf32>
    %36 = vector.broadcast %35 : vector<1x128xf32> to vector<2x128xf32>
    %c0_16 = arith.constant 0 : index
    %c0_17 = arith.constant 0 : index
    %37 = vector.load %arg0[%c0_16, %c0_17] : memref<16x4xf32, #tpu.memory_space<vmem>>, vector<16x4xf32>
    %cst_18 = arith.constant dense<0.000000e+00> : vector<16x128xf32>
    %38 = tpu.matmul %37, %21, %cst_18 {dimension_numbers = #tpu.dot_dimension_numbers<[1], [0], [0], [1], [0, 0, 1, 1], [], []>} : vector<16x4xf32>, vector<4x128xf32>, vector<16x128xf32> -> vector<16x128xf32>
    %39 = vector.broadcast %32 : vector<1x128xf32> to vector<16x128xf32>
    %40 = arith.addf %38, %39 : vector<16x128xf32>
    %cst_19 = arith.constant 0.000000e+00 : f32
    %41 = vector.broadcast %cst_19 : f32 to vector<2x32xf32>
    %cst_20 = arith.constant 0.000000e+00 : f32
    %42 = vector.broadcast %cst_20 : f32 to vector<2x32xf32>
    %cst_21 = arith.constant 0.000000e+00 : f32
    %43 = vector.broadcast %cst_21 : f32 to vector<2x32xf32>
    %cst_22 = arith.constant 0.000000e+00 : f32
    %44 = vector.broadcast %cst_22 : f32 to vector<2x32xf32>
    %45 = vector.extract_strided_slice %40 {offsets = [0, 0], sizes = [2, 128], strides = [1, 1]} : vector<16x128xf32> to vector<2x128xf32>
    %cst_23 = arith.constant dense<0.000000e+00> : vector<2x128xf32>
    %46 = tpu.matmul %41, %27, %cst_23 {dimension_numbers = #tpu.dot_dimension_numbers<[1], [0], [0], [1], [0, 0, 1, 1], [], []>} : vector<2x32xf32>, vector<32x128xf32>, vector<2x128xf32> -> vector<2x128xf32>
    %47 = arith.addf %45, %46 : vector<2x128xf32>
    %48 = arith.negf %47 : vector<2x128xf32>
    %49 = math.exp %48 : vector<2x128xf32>
    %cst_24 = arith.constant 1.000000e+00 : f32
    %50 = vector.broadcast %cst_24 : f32 to vector<2x128xf32>
    %51 = arith.addf %50, %49 : vector<2x128xf32>
    %52 = arith.divf %50, %51 : vector<2x128xf32>
    %53 = arith.mulf %52, %13 : vector<2x128xf32>
    %54 = arith.addf %53, %18 : vector<2x128xf32>
    %55 = vector.extract_strided_slice %54 {offsets = [0, 0], sizes = [2, 32], strides = [1, 1]} : vector<2x128xf32> to vector<2x32xf32>
    %56 = vector.extract_strided_slice %54 {offsets = [0, 32], sizes = [2, 32], strides = [1, 1]} : vector<2x128xf32> to vector<2x32xf32>
    %57 = vector.extract_strided_slice %54 {offsets = [0, 64], sizes = [2, 32], strides = [1, 1]} : vector<2x128xf32> to vector<2x32xf32>
    %58 = vector.extract_strided_slice %54 {offsets = [0, 96], sizes = [2, 32], strides = [1, 1]} : vector<2x128xf32> to vector<2x32xf32>
    %59 = arith.mulf %56, %43 : vector<2x32xf32>
    %60 = arith.mulf %55, %57 : vector<2x32xf32>
    %61 = arith.addf %59, %60 : vector<2x32xf32>
    %62 = math.tanh %61 : vector<2x32xf32>
    %63 = arith.mulf %58, %62 : vector<2x32xf32>
    %cst_25 = arith.constant dense<0.000000e+00> : vector<2x128xf32>
    %64 = tpu.matmul %63, %24, %cst_25 {dimension_numbers = #tpu.dot_dimension_numbers<[1], [0], [0], [1], [0, 0, 1, 1], [], []>} : vector<2x32xf32>, vector<32x128xf32>, vector<2x128xf32> -> vector<2x128xf32>
    %cst_26 = arith.constant dense<0.000000e+00> : vector<2x128xf32>
    %65 = tpu.matmul %42, %30, %cst_26 {dimension_numbers = #tpu.dot_dimension_numbers<[1], [0], [0], [1], [0, 0, 1, 1], [], []>} : vector<2x32xf32>, vector<32x128xf32>, vector<2x128xf32> -> vector<2x128xf32>
    %66 = arith.addf %64, %65 : vector<2x128xf32>
    %67 = arith.addf %66, %36 : vector<2x128xf32>
    %68 = arith.negf %67 : vector<2x128xf32>
    %69 = math.exp %68 : vector<2x128xf32>
    %cst_27 = arith.constant 1.000000e+00 : f32
    %70 = vector.broadcast %cst_27 : f32 to vector<2x128xf32>
    %71 = arith.addf %70, %69 : vector<2x128xf32>
    %72 = arith.divf %70, %71 : vector<2x128xf32>
    %73 = arith.mulf %72, %13 : vector<2x128xf32>
    %74 = arith.addf %73, %18 : vector<2x128xf32>
    %75 = vector.extract_strided_slice %74 {offsets = [0, 0], sizes = [2, 32], strides = [1, 1]} : vector<2x128xf32> to vector<2x32xf32>
    %76 = vector.extract_strided_slice %74 {offsets = [0, 32], sizes = [2, 32], strides = [1, 1]} : vector<2x128xf32> to vector<2x32xf32>
    %77 = vector.extract_strided_slice %74 {offsets = [0, 64], sizes = [2, 32], strides = [1, 1]} : vector<2x128xf32> to vector<2x32xf32>
    %78 = vector.extract_strided_slice %74 {offsets = [0, 96], sizes = [2, 32], strides = [1, 1]} : vector<2x128xf32> to vector<2x32xf32>
    %79 = arith.mulf %76, %44 : vector<2x32xf32>
    %80 = arith.mulf %75, %77 : vector<2x32xf32>
    %81 = arith.addf %79, %80 : vector<2x32xf32>
    %82 = math.tanh %81 : vector<2x32xf32>
    %83 = arith.mulf %78, %82 : vector<2x32xf32>
    %c0_28 = arith.constant 0 : index
    %c0_29 = arith.constant 0 : index
    %84 = vector.load %arg10[%c0_28, %c0_29] : memref<16x32xf32, #tpu.memory_space<vmem>>, vector<2x32xf32>
    tpu.vector_store %arg10[%c0_28, %c0_29], %83 {strides = array<i32>} : memref<16x32xf32, #tpu.memory_space<vmem>>, vector<2x32xf32>,
    %85 = vector.extract_strided_slice %40 {offsets = [2, 0], sizes = [2, 128], strides = [1, 1]} : vector<16x128xf32> to vector<2x128xf32>
    %cst_30 = arith.constant dense<0.000000e+00> : vector<2x128xf32>
    %86 = tpu.matmul %63, %27, %cst_30 {dimension_numbers = #tpu.dot_dimension_numbers<[1], [0], [0], [1], [0, 0, 1, 1], [], []>} : vector<2x32xf32>, vector<32x128xf32>, vector<2x128xf32> -> vector<2x128xf32>
    %87 = arith.addf %85, %86 : vector<2x128xf32>
    %88 = arith.negf %87 : vector<2x128xf32>
    %89 = math.exp %88 : vector<2x128xf32>
    %cst_31 = arith.constant 1.000000e+00 : f32
    %90 = vector.broadcast %cst_31 : f32 to vector<2x128xf32>
    %91 = arith.addf %90, %89 : vector<2x128xf32>
    %92 = arith.divf %90, %91 : vector<2x128xf32>
    %93 = arith.mulf %92, %13 : vector<2x128xf32>
    %94 = arith.addf %93, %18 : vector<2x128xf32>
    %95 = vector.extract_strided_slice %94 {offsets = [0, 0], sizes = [2, 32], strides = [1, 1]} : vector<2x128xf32> to vector<2x32xf32>
    %96 = vector.extract_strided_slice %94 {offsets = [0, 32], sizes = [2, 32], strides = [1, 1]} : vector<2x128xf32> to vector<2x32xf32>
    %97 = vector.extract_strided_slice %94 {offsets = [0, 64], sizes = [2, 32], strides = [1, 1]} : vector<2x128xf32> to vector<2x32xf32>
    %98 = vector.extract_strided_slice %94 {offsets = [0, 96], sizes = [2, 32], strides = [1, 1]} : vector<2x128xf32> to vector<2x32xf32>
    %99 = arith.mulf %96, %61 : vector<2x32xf32>
    %100 = arith.mulf %95, %97 : vector<2x32xf32>
    %101 = arith.addf %99, %100 : vector<2x32xf32>
    %102 = math.tanh %101 : vector<2x32xf32>
    %103 = arith.mulf %98, %102 : vector<2x32xf32>
    %cst_32 = arith.constant dense<0.000000e+00> : vector<2x128xf32>
    %104 = tpu.matmul %103, %24, %cst_32 {dimension_numbers = #tpu.dot_dimension_numbers<[1], [0], [0], [1], [0, 0, 1, 1], [], []>} : vector<2x32xf32>, vector<32x128xf32>, vector<2x128xf32> -> vector<2x128xf32>
    %cst_33 = arith.constant dense<0.000000e+00> : vector<2x128xf32>
    %105 = tpu.matmul %83, %30, %cst_33 {dimension_numbers = #tpu.dot_dimension_numbers<[1], [0], [0], [1], [0, 0, 1, 1], [], []>} : vector<2x32xf32>, vector<32x128xf32>, vector<2x128xf32> -> vector<2x128xf32>
    %106 = arith.addf %104, %105 : vector<2x128xf32>
    %107 = arith.addf %106, %36 : vector<2x128xf32>
    %108 = arith.negf %107 : vector<2x128xf32>
    %109 = math.exp %108 : vector<2x128xf32>
    %cst_34 = arith.constant 1.000000e+00 : f32
    %110 = vector.broadcast %cst_34 : f32 to vector<2x128xf32>
    %111 = arith.addf %110, %109 : vector<2x128xf32>
    %112 = arith.divf %110, %111 : vector<2x128xf32>
    %113 = arith.mulf %112, %13 : vector<2x128xf32>
    %114 = arith.addf %113, %18 : vector<2x128xf32>
    %115 = vector.extract_strided_slice %114 {offsets = [0, 0], sizes = [2, 32], strides = [1, 1]} : vector<2x128xf32> to vector<2x32xf32>
    %116 = vector.extract_strided_slice %114 {offsets = [0, 32], sizes = [2, 32], strides = [1, 1]} : vector<2x128xf32> to vector<2x32xf32>
    %117 = vector.extract_strided_slice %114 {offsets = [0, 64], sizes = [2, 32], strides = [1, 1]} : vector<2x128xf32> to vector<2x32xf32>
    %118 = vector.extract_strided_slice %114 {offsets = [0, 96], sizes = [2, 32], strides = [1, 1]} : vector<2x128xf32> to vector<2x32xf32>
    %119 = arith.mulf %116, %81 : vector<2x32xf32>
    %120 = arith.mulf %115, %117 : vector<2x32xf32>
    %121 = arith.addf %119, %120 : vector<2x32xf32>
    %122 = math.tanh %121 : vector<2x32xf32>
    %123 = arith.mulf %118, %122 : vector<2x32xf32>
    %c2 = arith.constant 2 : index
    %c0_35 = arith.constant 0 : index
    %124 = vector.load %arg10[%c2, %c0_35] : memref<16x32xf32, #tpu.memory_space<vmem>>, vector<2x32xf32>
    tpu.vector_store %arg10[%c2, %c0_35], %123 {strides = array<i32>} : memref<16x32xf32, #tpu.memory_space<vmem>>, vector<2x32xf32>,
    %125 = vector.extract_strided_slice %40 {offsets = [4, 0], sizes = [2, 128], strides = [1, 1]} : vector<16x128xf32> to vector<2x128xf32>
    %cst_36 = arith.constant dense<0.000000e+00> : vector<2x128xf32>
    %126 = tpu.matmul %103, %27, %cst_36 {dimension_numbers = #tpu.dot_dimension_numbers<[1], [0], [0], [1], [0, 0, 1, 1], [], []>} : vector<2x32xf32>, vector<32x128xf32>, vector<2x128xf32> -> vector<2x128xf32>
    %127 = arith.addf %125, %126 : vector<2x128xf32>
    %128 = arith.negf %127 : vector<2x128xf32>
    %129 = math.exp %128 : vector<2x128xf32>
    %cst_37 = arith.constant 1.000000e+00 : f32
    %130 = vector.broadcast %cst_37 : f32 to vector<2x128xf32>
    %131 = arith.addf %130, %129 : vector<2x128xf32>
    %132 = arith.divf %130, %131 : vector<2x128xf32>
    %133 = arith.mulf %132, %13 : vector<2x128xf32>
    %134 = arith.addf %133, %18 : vector<2x128xf32>
    %135 = vector.extract_strided_slice %134 {offsets = [0, 0], sizes = [2, 32], strides = [1, 1]} : vector<2x128xf32> to vector<2x32xf32>
    %136 = vector.extract_strided_slice %134 {offsets = [0, 32], sizes = [2, 32], strides = [1, 1]} : vector<2x128xf32> to vector<2x32xf32>
    %137 = vector.extract_strided_slice %134 {offsets = [0, 64], sizes = [2, 32], strides = [1, 1]} : vector<2x128xf32> to vector<2x32xf32>
    %138 = vector.extract_strided_slice %134 {offsets = [0, 96], sizes = [2, 32], strides = [1, 1]} : vector<2x128xf32> to vector<2x32xf32>
    %139 = arith.mulf %136, %101 : vector<2x32xf32>
    %140 = arith.mulf %135, %137 : vector<2x32xf32>
    %141 = arith.addf %139, %140 : vector<2x32xf32>
    %142 = math.tanh %141 : vector<2x32xf32>
    %143 = arith.mulf %138, %142 : vector<2x32xf32>
    %cst_38 = arith.constant dense<0.000000e+00> : vector<2x128xf32>
    %144 = tpu.matmul %143, %24, %cst_38 {dimension_numbers = #tpu.dot_dimension_numbers<[1], [0], [0], [1], [0, 0, 1, 1], [], []>} : vector<2x32xf32>, vector<32x128xf32>, vector<2x128xf32> -> vector<2x128xf32>
    %cst_39 = arith.constant dense<0.000000e+00> : vector<2x128xf32>
    %145 = tpu.matmul %123, %30, %cst_39 {dimension_numbers = #tpu.dot_dimension_numbers<[1], [0], [0], [1], [0, 0, 1, 1], [], []>} : vector<2x32xf32>, vector<32x128xf32>, vector<2x128xf32> -> vector<2x128xf32>
    %146 = arith.addf %144, %145 : vector<2x128xf32>
    %147 = arith.addf %146, %36 : vector<2x128xf32>
    %148 = arith.negf %147 : vector<2x128xf32>
    %149 = math.exp %148 : vector<2x128xf32>
    %cst_40 = arith.constant 1.000000e+00 : f32
    %150 = vector.broadcast %cst_40 : f32 to vector<2x128xf32>
    %151 = arith.addf %150, %149 : vector<2x128xf32>
    %152 = arith.divf %150, %151 : vector<2x128xf32>
    %153 = arith.mulf %152, %13 : vector<2x128xf32>
    %154 = arith.addf %153, %18 : vector<2x128xf32>
    %155 = vector.extract_strided_slice %154 {offsets = [0, 0], sizes = [2, 32], strides = [1, 1]} : vector<2x128xf32> to vector<2x32xf32>
    %156 = vector.extract_strided_slice %154 {offsets = [0, 32], sizes = [2, 32], strides = [1, 1]} : vector<2x128xf32> to vector<2x32xf32>
    %157 = vector.extract_strided_slice %154 {offsets = [0, 64], sizes = [2, 32], strides = [1, 1]} : vector<2x128xf32> to vector<2x32xf32>
    %158 = vector.extract_strided_slice %154 {offsets = [0, 96], sizes = [2, 32], strides = [1, 1]} : vector<2x128xf32> to vector<2x32xf32>
    %159 = arith.mulf %156, %121 : vector<2x32xf32>
    %160 = arith.mulf %155, %157 : vector<2x32xf32>
    %161 = arith.addf %159, %160 : vector<2x32xf32>
    %162 = math.tanh %161 : vector<2x32xf32>
    %163 = arith.mulf %158, %162 : vector<2x32xf32>
    %c4 = arith.constant 4 : index
    %c0_41 = arith.constant 0 : index
    %164 = vector.load %arg10[%c4, %c0_41] : memref<16x32xf32, #tpu.memory_space<vmem>>, vector<2x32xf32>
    tpu.vector_store %arg10[%c4, %c0_41], %163 {strides = array<i32>} : memref<16x32xf32, #tpu.memory_space<vmem>>, vector<2x32xf32>,
    %165 = vector.extract_strided_slice %40 {offsets = [6, 0], sizes = [2, 128], strides = [1, 1]} : vector<16x128xf32> to vector<2x128xf32>
    %cst_42 = arith.constant dense<0.000000e+00> : vector<2x128xf32>
    %166 = tpu.matmul %143, %27, %cst_42 {dimension_numbers = #tpu.dot_dimension_numbers<[1], [0], [0], [1], [0, 0, 1, 1], [], []>} : vector<2x32xf32>, vector<32x128xf32>, vector<2x128xf32> -> vector<2x128xf32>
    %167 = arith.addf %165, %166 : vector<2x128xf32>
    %168 = arith.negf %167 : vector<2x128xf32>
    %169 = math.exp %168 : vector<2x128xf32>
    %cst_43 = arith.constant 1.000000e+00 : f32
    %170 = vector.broadcast %cst_43 : f32 to vector<2x128xf32>
    %171 = arith.addf %170, %169 : vector<2x128xf32>
    %172 = arith.divf %170, %171 : vector<2x128xf32>
    %173 = arith.mulf %172, %13 : vector<2x128xf32>
    %174 = arith.addf %173, %18 : vector<2x128xf32>
    %175 = vector.extract_strided_slice %174 {offsets = [0, 0], sizes = [2, 32], strides = [1, 1]} : vector<2x128xf32> to vector<2x32xf32>
    %176 = vector.extract_strided_slice %174 {offsets = [0, 32], sizes = [2, 32], strides = [1, 1]} : vector<2x128xf32> to vector<2x32xf32>
    %177 = vector.extract_strided_slice %174 {offsets = [0, 64], sizes = [2, 32], strides = [1, 1]} : vector<2x128xf32> to vector<2x32xf32>
    %178 = vector.extract_strided_slice %174 {offsets = [0, 96], sizes = [2, 32], strides = [1, 1]} : vector<2x128xf32> to vector<2x32xf32>
    %179 = arith.mulf %176, %141 : vector<2x32xf32>
    %180 = arith.mulf %175, %177 : vector<2x32xf32>
    %181 = arith.addf %179, %180 : vector<2x32xf32>
    %182 = math.tanh %181 : vector<2x32xf32>
    %183 = arith.mulf %178, %182 : vector<2x32xf32>
    %cst_44 = arith.constant dense<0.000000e+00> : vector<2x128xf32>
    %184 = tpu.matmul %183, %24, %cst_44 {dimension_numbers = #tpu.dot_dimension_numbers<[1], [0], [0], [1], [0, 0, 1, 1], [], []>} : vector<2x32xf32>, vector<32x128xf32>, vector<2x128xf32> -> vector<2x128xf32>
    %cst_45 = arith.constant dense<0.000000e+00> : vector<2x128xf32>
    %185 = tpu.matmul %163, %30, %cst_45 {dimension_numbers = #tpu.dot_dimension_numbers<[1], [0], [0], [1], [0, 0, 1, 1], [], []>} : vector<2x32xf32>, vector<32x128xf32>, vector<2x128xf32> -> vector<2x128xf32>
    %186 = arith.addf %184, %185 : vector<2x128xf32>
    %187 = arith.addf %186, %36 : vector<2x128xf32>
    %188 = arith.negf %187 : vector<2x128xf32>
    %189 = math.exp %188 : vector<2x128xf32>
    %cst_46 = arith.constant 1.000000e+00 : f32
    %190 = vector.broadcast %cst_46 : f32 to vector<2x128xf32>
    %191 = arith.addf %190, %189 : vector<2x128xf32>
    %192 = arith.divf %190, %191 : vector<2x128xf32>
    %193 = arith.mulf %192, %13 : vector<2x128xf32>
    %194 = arith.addf %193, %18 : vector<2x128xf32>
    %195 = vector.extract_strided_slice %194 {offsets = [0, 0], sizes = [2, 32], strides = [1, 1]} : vector<2x128xf32> to vector<2x32xf32>
    %196 = vector.extract_strided_slice %194 {offsets = [0, 32], sizes = [2, 32], strides = [1, 1]} : vector<2x128xf32> to vector<2x32xf32>
    %197 = vector.extract_strided_slice %194 {offsets = [0, 64], sizes = [2, 32], strides = [1, 1]} : vector<2x128xf32> to vector<2x32xf32>
    %198 = vector.extract_strided_slice %194 {offsets = [0, 96], sizes = [2, 32], strides = [1, 1]} : vector<2x128xf32> to vector<2x32xf32>
    %199 = arith.mulf %196, %161 : vector<2x32xf32>
    %200 = arith.mulf %195, %197 : vector<2x32xf32>
    %201 = arith.addf %199, %200 : vector<2x32xf32>
    %202 = math.tanh %201 : vector<2x32xf32>
    %203 = arith.mulf %198, %202 : vector<2x32xf32>
    %c6 = arith.constant 6 : index
    %c0_47 = arith.constant 0 : index
    %204 = vector.load %arg10[%c6, %c0_47] : memref<16x32xf32, #tpu.memory_space<vmem>>, vector<2x32xf32>
    tpu.vector_store %arg10[%c6, %c0_47], %203 {strides = array<i32>} : memref<16x32xf32, #tpu.memory_space<vmem>>, vector<2x32xf32>,
    %205 = vector.extract_strided_slice %40 {offsets = [8, 0], sizes = [2, 128], strides = [1, 1]} : vector<16x128xf32> to vector<2x128xf32>
    %cst_48 = arith.constant dense<0.000000e+00> : vector<2x128xf32>
    %206 = tpu.matmul %183, %27, %cst_48 {dimension_numbers = #tpu.dot_dimension_numbers<[1], [0], [0], [1], [0, 0, 1, 1], [], []>} : vector<2x32xf32>, vector<32x128xf32>, vector<2x128xf32> -> vector<2x128xf32>
    %207 = arith.addf %205, %206 : vector<2x128xf32>
    %208 = arith.negf %207 : vector<2x128xf32>
    %209 = math.exp %208 : vector<2x128xf32>
    %cst_49 = arith.constant 1.000000e+00 : f32
    %210 = vector.broadcast %cst_49 : f32 to vector<2x128xf32>
    %211 = arith.addf %210, %209 : vector<2x128xf32>
    %212 = arith.divf %210, %211 : vector<2x128xf32>
    %213 = arith.mulf %212, %13 : vector<2x128xf32>
    %214 = arith.addf %213, %18 : vector<2x128xf32>
    %215 = vector.extract_strided_slice %214 {offsets = [0, 0], sizes = [2, 32], strides = [1, 1]} : vector<2x128xf32> to vector<2x32xf32>
    %216 = vector.extract_strided_slice %214 {offsets = [0, 32], sizes = [2, 32], strides = [1, 1]} : vector<2x128xf32> to vector<2x32xf32>
    %217 = vector.extract_strided_slice %214 {offsets = [0, 64], sizes = [2, 32], strides = [1, 1]} : vector<2x128xf32> to vector<2x32xf32>
    %218 = vector.extract_strided_slice %214 {offsets = [0, 96], sizes = [2, 32], strides = [1, 1]} : vector<2x128xf32> to vector<2x32xf32>
    %219 = arith.mulf %216, %181 : vector<2x32xf32>
    %220 = arith.mulf %215, %217 : vector<2x32xf32>
    %221 = arith.addf %219, %220 : vector<2x32xf32>
    %222 = math.tanh %221 : vector<2x32xf32>
    %223 = arith.mulf %218, %222 : vector<2x32xf32>
    %cst_50 = arith.constant dense<0.000000e+00> : vector<2x128xf32>
    %224 = tpu.matmul %223, %24, %cst_50 {dimension_numbers = #tpu.dot_dimension_numbers<[1], [0], [0], [1], [0, 0, 1, 1], [], []>} : vector<2x32xf32>, vector<32x128xf32>, vector<2x128xf32> -> vector<2x128xf32>
    %cst_51 = arith.constant dense<0.000000e+00> : vector<2x128xf32>
    %225 = tpu.matmul %203, %30, %cst_51 {dimension_numbers = #tpu.dot_dimension_numbers<[1], [0], [0], [1], [0, 0, 1, 1], [], []>} : vector<2x32xf32>, vector<32x128xf32>, vector<2x128xf32> -> vector<2x128xf32>
    %226 = arith.addf %224, %225 : vector<2x128xf32>
    %227 = arith.addf %226, %36 : vector<2x128xf32>
    %228 = arith.negf %227 : vector<2x128xf32>
    %229 = math.exp %228 : vector<2x128xf32>
    %cst_52 = arith.constant 1.000000e+00 : f32
    %230 = vector.broadcast %cst_52 : f32 to vector<2x128xf32>
    %231 = arith.addf %230, %229 : vector<2x128xf32>
    %232 = arith.divf %230, %231 : vector<2x128xf32>
    %233 = arith.mulf %232, %13 : vector<2x128xf32>
    %234 = arith.addf %233, %18 : vector<2x128xf32>
    %235 = vector.extract_strided_slice %234 {offsets = [0, 0], sizes = [2, 32], strides = [1, 1]} : vector<2x128xf32> to vector<2x32xf32>
    %236 = vector.extract_strided_slice %234 {offsets = [0, 32], sizes = [2, 32], strides = [1, 1]} : vector<2x128xf32> to vector<2x32xf32>
    %237 = vector.extract_strided_slice %234 {offsets = [0, 64], sizes = [2, 32], strides = [1, 1]} : vector<2x128xf32> to vector<2x32xf32>
    %238 = vector.extract_strided_slice %234 {offsets = [0, 96], sizes = [2, 32], strides = [1, 1]} : vector<2x128xf32> to vector<2x32xf32>
    %239 = arith.mulf %236, %201 : vector<2x32xf32>
    %240 = arith.mulf %235, %237 : vector<2x32xf32>
    %241 = arith.addf %239, %240 : vector<2x32xf32>
    %242 = math.tanh %241 : vector<2x32xf32>
    %243 = arith.mulf %238, %242 : vector<2x32xf32>
    %c8 = arith.constant 8 : index
    %c0_53 = arith.constant 0 : index
    %244 = vector.load %arg10[%c8, %c0_53] : memref<16x32xf32, #tpu.memory_space<vmem>>, vector<2x32xf32>
    tpu.vector_store %arg10[%c8, %c0_53], %243 {strides = array<i32>} : memref<16x32xf32, #tpu.memory_space<vmem>>, vector<2x32xf32>,
    %245 = vector.extract_strided_slice %40 {offsets = [10, 0], sizes = [2, 128], strides = [1, 1]} : vector<16x128xf32> to vector<2x128xf32>
    %cst_54 = arith.constant dense<0.000000e+00> : vector<2x128xf32>
    %246 = tpu.matmul %223, %27, %cst_54 {dimension_numbers = #tpu.dot_dimension_numbers<[1], [0], [0], [1], [0, 0, 1, 1], [], []>} : vector<2x32xf32>, vector<32x128xf32>, vector<2x128xf32> -> vector<2x128xf32>
    %247 = arith.addf %245, %246 : vector<2x128xf32>
    %248 = arith.negf %247 : vector<2x128xf32>
    %249 = math.exp %248 : vector<2x128xf32>
    %cst_55 = arith.constant 1.000000e+00 : f32
    %250 = vector.broadcast %cst_55 : f32 to vector<2x128xf32>
    %251 = arith.addf %250, %249 : vector<2x128xf32>
    %252 = arith.divf %250, %251 : vector<2x128xf32>
    %253 = arith.mulf %252, %13 : vector<2x128xf32>
    %254 = arith.addf %253, %18 : vector<2x128xf32>
    %255 = vector.extract_strided_slice %254 {offsets = [0, 0], sizes = [2, 32], strides = [1, 1]} : vector<2x128xf32> to vector<2x32xf32>
    %256 = vector.extract_strided_slice %254 {offsets = [0, 32], sizes = [2, 32], strides = [1, 1]} : vector<2x128xf32> to vector<2x32xf32>
    %257 = vector.extract_strided_slice %254 {offsets = [0, 64], sizes = [2, 32], strides = [1, 1]} : vector<2x128xf32> to vector<2x32xf32>
    %258 = vector.extract_strided_slice %254 {offsets = [0, 96], sizes = [2, 32], strides = [1, 1]} : vector<2x128xf32> to vector<2x32xf32>
    %259 = arith.mulf %256, %221 : vector<2x32xf32>
    %260 = arith.mulf %255, %257 : vector<2x32xf32>
    %261 = arith.addf %259, %260 : vector<2x32xf32>
    %262 = math.tanh %261 : vector<2x32xf32>
    %263 = arith.mulf %258, %262 : vector<2x32xf32>
    %cst_56 = arith.constant dense<0.000000e+00> : vector<2x128xf32>
    %264 = tpu.matmul %263, %24, %cst_56 {dimension_numbers = #tpu.dot_dimension_numbers<[1], [0], [0], [1], [0, 0, 1, 1], [], []>} : vector<2x32xf32>, vector<32x128xf32>, vector<2x128xf32> -> vector<2x128xf32>
    %cst_57 = arith.constant dense<0.000000e+00> : vector<2x128xf32>
    %265 = tpu.matmul %243, %30, %cst_57 {dimension_numbers = #tpu.dot_dimension_numbers<[1], [0], [0], [1], [0, 0, 1, 1], [], []>} : vector<2x32xf32>, vector<32x128xf32>, vector<2x128xf32> -> vector<2x128xf32>
    %266 = arith.addf %264, %265 : vector<2x128xf32>
    %267 = arith.addf %266, %36 : vector<2x128xf32>
    %268 = arith.negf %267 : vector<2x128xf32>
    %269 = math.exp %268 : vector<2x128xf32>
    %cst_58 = arith.constant 1.000000e+00 : f32
    %270 = vector.broadcast %cst_58 : f32 to vector<2x128xf32>
    %271 = arith.addf %270, %269 : vector<2x128xf32>
    %272 = arith.divf %270, %271 : vector<2x128xf32>
    %273 = arith.mulf %272, %13 : vector<2x128xf32>
    %274 = arith.addf %273, %18 : vector<2x128xf32>
    %275 = vector.extract_strided_slice %274 {offsets = [0, 0], sizes = [2, 32], strides = [1, 1]} : vector<2x128xf32> to vector<2x32xf32>
    %276 = vector.extract_strided_slice %274 {offsets = [0, 32], sizes = [2, 32], strides = [1, 1]} : vector<2x128xf32> to vector<2x32xf32>
    %277 = vector.extract_strided_slice %274 {offsets = [0, 64], sizes = [2, 32], strides = [1, 1]} : vector<2x128xf32> to vector<2x32xf32>
    %278 = vector.extract_strided_slice %274 {offsets = [0, 96], sizes = [2, 32], strides = [1, 1]} : vector<2x128xf32> to vector<2x32xf32>
    %279 = arith.mulf %276, %241 : vector<2x32xf32>
    %280 = arith.mulf %275, %277 : vector<2x32xf32>
    %281 = arith.addf %279, %280 : vector<2x32xf32>
    %282 = math.tanh %281 : vector<2x32xf32>
    %283 = arith.mulf %278, %282 : vector<2x32xf32>
    %c10 = arith.constant 10 : index
    %c0_59 = arith.constant 0 : index
    %284 = vector.load %arg10[%c10, %c0_59] : memref<16x32xf32, #tpu.memory_space<vmem>>, vector<2x32xf32>
    tpu.vector_store %arg10[%c10, %c0_59], %283 {strides = array<i32>} : memref<16x32xf32, #tpu.memory_space<vmem>>, vector<2x32xf32>,
    %285 = vector.extract_strided_slice %40 {offsets = [12, 0], sizes = [2, 128], strides = [1, 1]} : vector<16x128xf32> to vector<2x128xf32>
    %cst_60 = arith.constant dense<0.000000e+00> : vector<2x128xf32>
    %286 = tpu.matmul %263, %27, %cst_60 {dimension_numbers = #tpu.dot_dimension_numbers<[1], [0], [0], [1], [0, 0, 1, 1], [], []>} : vector<2x32xf32>, vector<32x128xf32>, vector<2x128xf32> -> vector<2x128xf32>
    %287 = arith.addf %285, %286 : vector<2x128xf32>
    %288 = arith.negf %287 : vector<2x128xf32>
    %289 = math.exp %288 : vector<2x128xf32>
    %cst_61 = arith.constant 1.000000e+00 : f32
    %290 = vector.broadcast %cst_61 : f32 to vector<2x128xf32>
    %291 = arith.addf %290, %289 : vector<2x128xf32>
    %292 = arith.divf %290, %291 : vector<2x128xf32>
    %293 = arith.mulf %292, %13 : vector<2x128xf32>
    %294 = arith.addf %293, %18 : vector<2x128xf32>
    %295 = vector.extract_strided_slice %294 {offsets = [0, 0], sizes = [2, 32], strides = [1, 1]} : vector<2x128xf32> to vector<2x32xf32>
    %296 = vector.extract_strided_slice %294 {offsets = [0, 32], sizes = [2, 32], strides = [1, 1]} : vector<2x128xf32> to vector<2x32xf32>
    %297 = vector.extract_strided_slice %294 {offsets = [0, 64], sizes = [2, 32], strides = [1, 1]} : vector<2x128xf32> to vector<2x32xf32>
    %298 = vector.extract_strided_slice %294 {offsets = [0, 96], sizes = [2, 32], strides = [1, 1]} : vector<2x128xf32> to vector<2x32xf32>
    %299 = arith.mulf %296, %261 : vector<2x32xf32>
    %300 = arith.mulf %295, %297 : vector<2x32xf32>
    %301 = arith.addf %299, %300 : vector<2x32xf32>
    %302 = math.tanh %301 : vector<2x32xf32>
    %303 = arith.mulf %298, %302 : vector<2x32xf32>
    %cst_62 = arith.constant dense<0.000000e+00> : vector<2x128xf32>
    %304 = tpu.matmul %303, %24, %cst_62 {dimension_numbers = #tpu.dot_dimension_numbers<[1], [0], [0], [1], [0, 0, 1, 1], [], []>} : vector<2x32xf32>, vector<32x128xf32>, vector<2x128xf32> -> vector<2x128xf32>
    %cst_63 = arith.constant dense<0.000000e+00> : vector<2x128xf32>
    %305 = tpu.matmul %283, %30, %cst_63 {dimension_numbers = #tpu.dot_dimension_numbers<[1], [0], [0], [1], [0, 0, 1, 1], [], []>} : vector<2x32xf32>, vector<32x128xf32>, vector<2x128xf32> -> vector<2x128xf32>
    %306 = arith.addf %304, %305 : vector<2x128xf32>
    %307 = arith.addf %306, %36 : vector<2x128xf32>
    %308 = arith.negf %307 : vector<2x128xf32>
    %309 = math.exp %308 : vector<2x128xf32>
    %cst_64 = arith.constant 1.000000e+00 : f32
    %310 = vector.broadcast %cst_64 : f32 to vector<2x128xf32>
    %311 = arith.addf %310, %309 : vector<2x128xf32>
    %312 = arith.divf %310, %311 : vector<2x128xf32>
    %313 = arith.mulf %312, %13 : vector<2x128xf32>
    %314 = arith.addf %313, %18 : vector<2x128xf32>
    %315 = vector.extract_strided_slice %314 {offsets = [0, 0], sizes = [2, 32], strides = [1, 1]} : vector<2x128xf32> to vector<2x32xf32>
    %316 = vector.extract_strided_slice %314 {offsets = [0, 32], sizes = [2, 32], strides = [1, 1]} : vector<2x128xf32> to vector<2x32xf32>
    %317 = vector.extract_strided_slice %314 {offsets = [0, 64], sizes = [2, 32], strides = [1, 1]} : vector<2x128xf32> to vector<2x32xf32>
    %318 = vector.extract_strided_slice %314 {offsets = [0, 96], sizes = [2, 32], strides = [1, 1]} : vector<2x128xf32> to vector<2x32xf32>
    %319 = arith.mulf %316, %281 : vector<2x32xf32>
    %320 = arith.mulf %315, %317 : vector<2x32xf32>
    %321 = arith.addf %319, %320 : vector<2x32xf32>
    %322 = math.tanh %321 : vector<2x32xf32>
    %323 = arith.mulf %318, %322 : vector<2x32xf32>
    %c12 = arith.constant 12 : index
    %c0_65 = arith.constant 0 : index
    %324 = vector.load %arg10[%c12, %c0_65] : memref<16x32xf32, #tpu.memory_space<vmem>>, vector<2x32xf32>
    tpu.vector_store %arg10[%c12, %c0_65], %323 {strides = array<i32>} : memref<16x32xf32, #tpu.memory_space<vmem>>, vector<2x32xf32>,
    %325 = vector.extract_strided_slice %40 {offsets = [14, 0], sizes = [2, 128], strides = [1, 1]} : vector<16x128xf32> to vector<2x128xf32>
    %cst_66 = arith.constant dense<0.000000e+00> : vector<2x128xf32>
    %326 = tpu.matmul %303, %27, %cst_66 {dimension_numbers = #tpu.dot_dimension_numbers<[1], [0], [0], [1], [0, 0, 1, 1], [], []>} : vector<2x32xf32>, vector<32x128xf32>, vector<2x128xf32> -> vector<2x128xf32>
    %327 = arith.addf %325, %326 : vector<2x128xf32>
    %328 = arith.negf %327 : vector<2x128xf32>
    %329 = math.exp %328 : vector<2x128xf32>
    %cst_67 = arith.constant 1.000000e+00 : f32
    %330 = vector.broadcast %cst_67 : f32 to vector<2x128xf32>
    %331 = arith.addf %330, %329 : vector<2x128xf32>
    %332 = arith.divf %330, %331 : vector<2x128xf32>
    %333 = arith.mulf %332, %13 : vector<2x128xf32>
    %334 = arith.addf %333, %18 : vector<2x128xf32>
    %335 = vector.extract_strided_slice %334 {offsets = [0, 0], sizes = [2, 32], strides = [1, 1]} : vector<2x128xf32> to vector<2x32xf32>
    %336 = vector.extract_strided_slice %334 {offsets = [0, 32], sizes = [2, 32], strides = [1, 1]} : vector<2x128xf32> to vector<2x32xf32>
    %337 = vector.extract_strided_slice %334 {offsets = [0, 64], sizes = [2, 32], strides = [1, 1]} : vector<2x128xf32> to vector<2x32xf32>
    %338 = vector.extract_strided_slice %334 {offsets = [0, 96], sizes = [2, 32], strides = [1, 1]} : vector<2x128xf32> to vector<2x32xf32>
    %339 = arith.mulf %336, %301 : vector<2x32xf32>
    %340 = arith.mulf %335, %337 : vector<2x32xf32>
    %341 = arith.addf %339, %340 : vector<2x32xf32>
    %342 = math.tanh %341 : vector<2x32xf32>
    %343 = arith.mulf %338, %342 : vector<2x32xf32>
    %cst_68 = arith.constant dense<0.000000e+00> : vector<2x128xf32>
    %344 = tpu.matmul %343, %24, %cst_68 {dimension_numbers = #tpu.dot_dimension_numbers<[1], [0], [0], [1], [0, 0, 1, 1], [], []>} : vector<2x32xf32>, vector<32x128xf32>, vector<2x128xf32> -> vector<2x128xf32>
    %cst_69 = arith.constant dense<0.000000e+00> : vector<2x128xf32>
    %345 = tpu.matmul %323, %30, %cst_69 {dimension_numbers = #tpu.dot_dimension_numbers<[1], [0], [0], [1], [0, 0, 1, 1], [], []>} : vector<2x32xf32>, vector<32x128xf32>, vector<2x128xf32> -> vector<2x128xf32>
    %346 = arith.addf %344, %345 : vector<2x128xf32>
    %347 = arith.addf %346, %36 : vector<2x128xf32>
    %348 = arith.negf %347 : vector<2x128xf32>
    %349 = math.exp %348 : vector<2x128xf32>
    %cst_70 = arith.constant 1.000000e+00 : f32
    %350 = vector.broadcast %cst_70 : f32 to vector<2x128xf32>
    %351 = arith.addf %350, %349 : vector<2x128xf32>
    %352 = arith.divf %350, %351 : vector<2x128xf32>
    %353 = arith.mulf %352, %13 : vector<2x128xf32>
    %354 = arith.addf %353, %18 : vector<2x128xf32>
    %355 = vector.extract_strided_slice %354 {offsets = [0, 0], sizes = [2, 32], strides = [1, 1]} : vector<2x128xf32> to vector<2x32xf32>
    %356 = vector.extract_strided_slice %354 {offsets = [0, 32], sizes = [2, 32], strides = [1, 1]} : vector<2x128xf32> to vector<2x32xf32>
    %357 = vector.extract_strided_slice %354 {offsets = [0, 64], sizes = [2, 32], strides = [1, 1]} : vector<2x128xf32> to vector<2x32xf32>
    %358 = vector.extract_strided_slice %354 {offsets = [0, 96], sizes = [2, 32], strides = [1, 1]} : vector<2x128xf32> to vector<2x32xf32>
    %359 = arith.mulf %356, %321 : vector<2x32xf32>
    %360 = arith.mulf %355, %357 : vector<2x32xf32>
    %361 = arith.addf %359, %360 : vector<2x32xf32>
    %362 = math.tanh %361 : vector<2x32xf32>
    %363 = arith.mulf %358, %362 : vector<2x32xf32>
    %c14 = arith.constant 14 : index
    %c0_71 = arith.constant 0 : index
    %364 = vector.load %arg10[%c14, %c0_71] : memref<16x32xf32, #tpu.memory_space<vmem>>, vector<2x32xf32>
    tpu.vector_store %arg10[%c14, %c0_71], %363 {strides = array<i32>} : memref<16x32xf32, #tpu.memory_space<vmem>>, vector<2x32xf32>,
    %c0_72 = arith.constant 0 : index
    %c0_73 = arith.constant 0 : index
    %365 = vector.load %arg10[%c0_72, %c0_73] : memref<16x32xf32, #tpu.memory_space<vmem>>, vector<16x32xf32>
    %c0_74 = arith.constant 0 : index
    %c0_75 = arith.constant 0 : index
    %366 = vector.load %arg7[%c0_74, %c0_75] : memref<32x3xf32, #tpu.memory_space<vmem>>, vector<32x3xf32>
    %cst_76 = arith.constant dense<0.000000e+00> : vector<16x3xf32>
    %367 = tpu.matmul %365, %366, %cst_76 {dimension_numbers = #tpu.dot_dimension_numbers<[1], [0], [0], [1], [0, 0, 1, 1], [], []>} : vector<16x32xf32>, vector<32x3xf32>, vector<16x3xf32> -> vector<16x3xf32>
    %c0_77 = arith.constant 0 : index
    %c0_78 = arith.constant 0 : index
    %368 = vector.load %arg8[%c0_77, %c0_78] : memref<1x3xf32, #tpu.memory_space<vmem>>, vector<1x3xf32>
    %369 = vector.broadcast %368 : vector<1x3xf32> to vector<16x3xf32>
    %370 = arith.addf %367, %369 : vector<16x3xf32>
    %c0_79 = arith.constant 0 : index
    %c0_80 = arith.constant 0 : index
    %371 = vector.load %arg9[%c0_79, %c0_80] : memref<16x3xf32, #tpu.memory_space<vmem>>, vector<16x3xf32>
    tpu.vector_store %arg9[%c0_79, %c0_80], %370 {strides = array<i32>} : memref<16x3xf32, #tpu.memory_space<vmem>>, vector<16x3xf32>,
    return
  }
}

</mosaic_0001>

<llo_original>
// kernel: deepvarwt_forward.1
$region0: #{deepvarwt_forward.1}
  #allocation0 [shape = 'u32[]', space=smem, size = 0x4, offset = 0x4, fixed_abs, tag = 'smem constant byte address 0x4 - core index']
  #allocation1 [shape = 'u32[144,128]{1,0:T(1,128)}', space=vmem, size = 0x12000, scoped, tag = 'internal scratch']
  #allocation2 [shape = 'f32[16,32]{1,0:T(8,128)}', space=vmem, size = 0x2000, scoped, tag = 'scratch operand']
  %s0 = inlined_call_operand.vmem [shape: f32[16,4], index: 0, kind: input, shape index: {}]
  %s1 = inlined_call_operand.vmem [shape: f32[4,128], index: 1, kind: input, shape index: {}]
  %s2 = inlined_call_operand.vmem [shape: f32[32,128], index: 2, kind: input, shape index: {}]
  %s3 = inlined_call_operand.vmem [shape: f32[1,128], index: 3, kind: input, shape index: {}]
  %s4 = inlined_call_operand.vmem [shape: f32[32,128], index: 4, kind: input, shape index: {}]
  %s5 = inlined_call_operand.hbm [shape: f32[32,128], index: 5, kind: input, shape index: {}]
  %s6 = inlined_call_operand.vmem [shape: f32[1,128], index: 6, kind: input, shape index: {}]
  %s7 = inlined_call_operand.vmem [shape: f32[32,3], index: 7, kind: input, shape index: {}]
  %s8 = inlined_call_operand.hbm [shape: f32[1,3], index: 8, kind: input, shape index: {}]
  %s9 = inlined_call_operand.vmem [shape: f32[16,3], index: 9, kind: output, shape index: {}]
  %s10 = sld [smem:[#allocation0]]
  $region54: #{deepvarwt_forward.1} parent=0
    _
  %s12 = ssub.s32 1, %s10
  %s13 = scalar_select 0, %s12, %s10
  $region1: #{deepvarwt_forward.1} parent=0
    #allocation3 [shape = 'u8[16384]{0}', space=vmem, size = 0x4000, scoped, tag = 'input window, operand 5, single buffered']
    #allocation4 [shape = 's32[1]{0}', space=sflag, size = 0x4, scoped, tag = 'scoped memory for deepvarwt_forward.1']
    #allocation5 [shape = 'u8[512]{0}', space=vmem, size = 0x400, scoped, tag = 'input window, operand 8, single buffered']
    #allocation6 [shape = 's32[1]{0}', space=sflag, size = 0x4, scoped, tag = 'scoped memory for deepvarwt_forward.1']
    %14 = vsyncpa [#allocation4], 0
    %15 = vsyncpa [#allocation6], 0
    // Predicated region
    $region2: #{deepvarwt_forward.1} parent=1 // pred_check
      _
    $region3: #{deepvarwt_forward.1} parent=1 // pred_check_branch
      %17 = sbr.rel (0) target = $region5
    $region4: #{deepvarwt_forward.1} parent=1 // pred_region
      _
    $region5: #{deepvarwt_forward.1} parent=1 // pred_fallthru
      _
    // Predicated region
    $region6: #{deepvarwt_forward.1} parent=1 // pred_check
      _
    $region7: #{deepvarwt_forward.1} parent=1 // pred_check_branch
      %19 = sbr.rel (0) target = $region9
    $region8: #{deepvarwt_forward.1} parent=1 // pred_region
      _
    $region9: #{deepvarwt_forward.1} parent=1 // pred_fallthru
      _
    // Predicated region
    $region10: #{deepvarwt_forward.1} parent=1 // pred_check
      _
    $region11: #{deepvarwt_forward.1} parent=1 // pred_check_branch
      %21 = sbr.rel (0) target = $region13
    $region12: #{deepvarwt_forward.1} parent=1 // pred_region
      _
    $region13: #{deepvarwt_forward.1} parent=1 // pred_fallthru
      _
    // Predicated region
    $region14: #{deepvarwt_forward.1} parent=1 // pred_check
      _
    $region15: #{deepvarwt_forward.1} parent=1 // pred_check_branch
      %23 = sbr.rel (0) target = $region17
    $region16: #{deepvarwt_forward.1} parent=1 // pred_region
      _
    $region17: #{deepvarwt_forward.1} parent=1 // pred_fallthru
      _
    // Predicated region
    $region18: #{deepvarwt_forward.1} parent=1 // pred_check
      _
    $region19: #{deepvarwt_forward.1} parent=1 // pred_check_branch
      %25 = sbr.rel (0) target = $region21
    $region20: #{deepvarwt_forward.1} parent=1 // pred_region
      _
    $region21: #{deepvarwt_forward.1} parent=1 // pred_fallthru
      _
    // Predicated region
    $region22: #{deepvarwt_forward.1} parent=1 // pred_check
      _
    $region23: #{deepvarwt_forward.1} parent=1 // pred_check_branch
      %27 = sbr.rel (0) target = $region25
    $region24: #{deepvarwt_forward.1} parent=1 // pred_region
      %s29 = ssub.s32 512, 512
      %30 = vsyncadd [#allocation4], %s29
      %s31 = sshll.u32 [#allocation3], 4
      %s32 = int_to_ptr.vmem [resolvable:$true] %s31
      %37 = dma.hbm_to_vmem [thread:$0]  %s5, 512, %s32, [#allocation4], 128, 128, 8
    $region25: #{deepvarwt_forward.1} parent=1 // pred_fallthru
      _
    // Predicated region
    $region26: #{deepvarwt_forward.1} parent=1 // pred_check
      _
    $region27: #{deepvarwt_forward.1} parent=1 // pred_check_branch
      %39 = sbr.rel (0) target = $region29
    $region28: #{deepvarwt_forward.1} parent=1 // pred_region
      _
    $region29: #{deepvarwt_forward.1} parent=1 // pred_fallthru
      _
    // Predicated region
    $region30: #{deepvarwt_forward.1} parent=1 // pred_check
      _
    $region31: #{deepvarwt_forward.1} parent=1 // pred_check_branch
      %41 = sbr.rel (0) target = $region33
    $region32: #{deepvarwt_forward.1} parent=1 // pred_region
      _
    $region33: #{deepvarwt_forward.1} parent=1 // pred_fallthru
      _
    // Predicated region
    $region34: #{deepvarwt_forward.1} parent=1 // pred_check
      _
    $region35: #{deepvarwt_forward.1} parent=1 // pred_check_branch
      %43 = sbr.rel (0) target = $region37
    $region36: #{deepvarwt_forward.1} parent=1 // pred_region
      %s45 = ssub.s32 16, 16
      %46 = vsyncadd [#allocation6], %s45
      %s48 = sshll.u32 [#allocation5], 4
      %s49 = int_to_ptr.vmem [resolvable:$true] %s48
      %51 = dma.hbm_to_vmem [thread:$0]  %s8, 16, %s49, [#allocation6]
    $region37: #{deepvarwt_forward.1} parent=1 // pred_fallthru
      _
    // Predicated region
    $region38: #{deepvarwt_forward.1} parent=1 // pred_check
      _
    $region39: #{deepvarwt_forward.1} parent=1 // pred_check_branch
      %53 = sbr.rel (0) target = $region41
    $region40: #{deepvarwt_forward.1} parent=1 // pred_region
      %54 = dma.done [#allocation4], 512
    $region41: #{deepvarwt_forward.1} parent=1 // pred_fallthru
      _
    // Predicated region
    $region42: #{deepvarwt_forward.1} parent=1 // pred_check
      _
    $region43: #{deepvarwt_forward.1} parent=1 // pred_check_branch
      %56 = sbr.rel (0) target = $region45
    $region44: #{deepvarwt_forward.1} parent=1 // pred_region
      %57 = dma.done [#allocation6], 16
    $region45: #{deepvarwt_forward.1} parent=1 // pred_fallthru
      _
    %v58 = vlaneseq
    %v59 = vand.u32 %v58, 127
    %vm60 = vcmp.ge.s32.totalorder %v59, 64
    %vm61 = vcmp.lt.s32.totalorder %v59, 96
    %vm62 = vmand %vm60, %vm61
    %v63 = vsel %vm62, 2.0, 1.0
    %v64 = vsel %vm62, -1.0, 0.0
    %v65 = vld [vmem:[%s1] sm:$0xf]
    %v66 = vmul.f32 %v65, %v63
    %v67 = vld [vmem:[%s4] sm:$0xff]
    %v68 = vld [vmem:[%s4 + $0x8] sm:$0xff]
    %v69 = vld [vmem:[%s4 + $0x10] sm:$0xff]
    %v70 = vld [vmem:[%s4 + $0x18] sm:$0xff]
    %v71 = vmul.f32 %v67, %v63
    %v72 = vmul.f32 %v68, %v63
    %v73 = vmul.f32 %v69, %v63
    %v74 = vmul.f32 %v70, %v63
    %v75 = vld [vmem:[%s2] sm:$0xff]
    %v76 = vld [vmem:[%s2 + $0x8] sm:$0xff]
    %v77 = vld [vmem:[%s2 + $0x10] sm:$0xff]
    %v78 = vld [vmem:[%s2 + $0x18] sm:$0xff]
    %v79 = vmul.f32 %v75, %v63
    %v80 = vmul.f32 %v76, %v63
    %v81 = vmul.f32 %v77, %v63
    %v82 = vmul.f32 %v78, %v63
    %v83 = vld [vmem:[#allocation3] sm:$0xff]
    %v84 = vld [vmem:[#allocation3 + $0x8] sm:$0xff]
    %v85 = vld [vmem:[#allocation3 + $0x10] sm:$0xff]
    %v86 = vld [vmem:[#allocation3 + $0x18] sm:$0xff]
    %v87 = vmul.f32 %v83, %v63
    %v88 = vmul.f32 %v84, %v63
    %v89 = vmul.f32 %v85, %v63
    %v90 = vmul.f32 %v86, %v63
    %v91 = vld [vmem:[%s3] sm:$0x1]
    %v92 = vmul.f32 %v91, %v63
    %v93 = vld [vmem:[%s6] sm:$0x1]
    %v94 = vmul.f32 %v93, %v63
    %v96 = vlaneseq
    %v97 = vshrl.u32 %v96, 7
    %v98 = vsub.s32 0, %v97
    %v99 = vrot.slane %v94, %v98
    %v101 = vld [vmem:[%s0] sm:$0xff]
    %v102 = vld [vmem:[%s0 + $0x8] sm:$0xff]
    %v104 = vlaneseq
    %v105 = vshrl.u32 %v104, 7
    %v106 = vsub.s32 0, %v105
    %v107 = vrot.slane %v92, %v106
    %vm109 = vcmask 31744
    %v111 = vsel %vm109, %v101, 0
    %v114 = vsel %vm109, %v102, 0
    %vm116 = vcmask 1043456
    %v118 = vsel %vm116, %v66, 0
    %120 = vmatprep.subr.mxu0 0.0
    %121 = vmatpush1.msra.mxu0 %v118
    %122 = vmatprep.subr.mxu0 0.0
    %123 = vmatpush1.msra.mxu0 0.0
    %124 = vmatprep.subr.mxu0 0.0
    %125 = vmatpush1.msra.mxu0 0.0
    %126 = vmatprep.subr.mxu0 0.0
    %127 = vmatpush1.msra.mxu0 0.0
    %128 = vmatprep.subr.mxu0 0.0
    %129 = vmatpush1.msra.mxu0 0.0
    %130 = vmatprep.subr.mxu0 0.0
    %131 = vmatpush1.msra.mxu0 0.0
    %132 = vmatprep.subr.mxu0 0.0
    %133 = vmatpush1.msra.mxu0 0.0
    %134 = vmatprep.subr.mxu0 0.0
    %135 = vmatpush1.msra.mxu0 0.0
    %136 = vmatprep.subr.mxu0 0.0
    %137 = vmatpush1.msra.mxu0 0.0
    %138 = vmatprep.subr.mxu0 0.0
    %139 = vmatpush1.msra.mxu0 0.0
    %140 = vmatprep.subr.mxu0 0.0
    %141 = vmatpush1.msra.mxu0 0.0
    %142 = vmatprep.subr.mxu0 0.0
    %143 = vmatpush1.msra.mxu0 0.0
    %144 = vmatprep.subr.mxu0 0.0
    %145 = vmatpush1.msra.mxu0 0.0
    %146 = vmatprep.subr.mxu0 0.0
    %147 = vmatpush1.msra.mxu0 0.0
    %148 = vmatprep.subr.mxu0 0.0
    %149 = vmatpush1.msra.mxu0 0.0
    %150 = vmatprep.subr.mxu0 0.0
    %151 = vmatpush1.msra.mxu0 0.0
    %152 = vmatprep.subr.mxu0 0.0
    %153 = vmatpush1.msra.mxu0 0.0
    %154 = vmatprep.subr.mxu0 0.0
    %155 = vmatpush1.msra.mxu0 0.0
    %156 = vmatprep.subr.mxu0 0.0
    %157 = vmatpush1.msra.mxu0 0.0
    %158 = vmatprep.subr.mxu0 0.0
    %159 = vmatpush1.msra.mxu0 0.0
    %160 = vmatprep.subr.mxu0 0.0
    %161 = vmatpush1.msra.mxu0 0.0
    %162 = vmatprep.subr.mxu0 0.0
    %163 = vmatpush1.msra.mxu0 0.0
    %164 = vmatprep.subr.mxu0 0.0
    %165 = vmatpush1.msra.mxu0 0.0
    %166 = vmatprep.subr.mxu0 0.0
    %167 = vmatpush1.msra.mxu0 0.0
    %168 = vmatprep.subr.mxu0 0.0
    %169 = vmatpush1.msra.mxu0 0.0
    %170 = vmatprep.subr.mxu0 0.0
    %171 = vmatpush1.msra.mxu0 0.0
    %172 = vmatprep.subr.mxu0 0.0
    %173 = vmatpush1.msra.mxu0 0.0
    %174 = vmatprep.subr.mxu0 0.0
    %175 = vmatpush1.msra.mxu0 0.0
    %176 = vmatprep.subr.mxu0 0.0
    %177 = vmatpush1.msra.mxu0 0.0
    %178 = vmatprep.subr.mxu0 0.0
    %179 = vmatpush1.msra.mxu0 0.0
    %180 = vmatprep.subr.mxu0 0.0
    %181 = vmatpush1.msra.mxu0 0.0
    %182 = vmatprep.subr.mxu0 0.0
    %183 = vmatpush1.msra.mxu0 0.0
    %184 = vmatprep.mubr.f32.mxu0 0.0
    %185 = vmatmul.mubr.f32.gmra.mrb[0].mxu0 %v111
    %v186 = vpop.f32.mrb[0].mxu0
    %v187 = vadd.f32 %v107, %v186
    %v188 = vpop.f32.mrb[0].mxu0
    %189 = vmatprep.mubr.f32.mxu0 0.0
    %190 = vmatmul.mubr.f32.gmra.mrb[0].mxu0 %v114
    %v191 = vpop.f32.mrb[0].mxu0
    %v192 = vadd.f32 %v107, %v191
    %v193 = vpop.f32.mrb[0].mxu0
    %194 = vdwg.mxu0
    %vm195 = vcmask 261120
    %v197 = vsel %vm195, 0.0, 0
    %199 = vmatprep.subr.mxu0 0.0
    %200 = vmatpush1.msra.mxu0 %v79
    %201 = vmatprep.subr.mxu0 0.0
    %202 = vmatpush1.msra.mxu0 %v80
    %203 = vmatprep.subr.mxu0 0.0
    %204 = vmatpush1.msra.mxu0 %v81
    %205 = vmatprep.subr.mxu0 0.0
    %206 = vmatpush1.msra.mxu0 %v82
    %207 = vmatprep.subr.mxu0 0.0
    %208 = vmatpush1.msra.mxu0 0.0
    %209 = vmatprep.subr.mxu0 0.0
    %210 = vmatpush1.msra.mxu0 0.0
    %211 = vmatprep.subr.mxu0 0.0
    %212 = vmatpush1.msra.mxu0 0.0
    %213 = vmatprep.subr.mxu0 0.0
    %214 = vmatpush1.msra.mxu0 0.0
    %215 = vmatprep.subr.mxu0 0.0
    %216 = vmatpush1.msra.mxu0 0.0
    %217 = vmatprep.subr.mxu0 0.0
    %218 = vmatpush1.msra.mxu0 0.0
    %219 = vmatprep.subr.mxu0 0.0
    %220 = vmatpush1.msra.mxu0 0.0
    %221 = vmatprep.subr.mxu0 0.0
    %222 = vmatpush1.msra.mxu0 0.0
    %223 = vmatprep.subr.mxu0 0.0
    %224 = vmatpush1.msra.mxu0 0.0
    %225 = vmatprep.subr.mxu0 0.0
    %226 = vmatpush1.msra.mxu0 0.0
    %227 = vmatprep.subr.mxu0 0.0
    %228 = vmatpush1.msra.mxu0 0.0
    %229 = vmatprep.subr.mxu0 0.0
    %230 = vmatpush1.msra.mxu0 0.0
    %231 = vmatprep.subr.mxu0 0.0
    %232 = vmatpush1.msra.mxu0 0.0
    %233 = vmatprep.subr.mxu0 0.0
    %234 = vmatpush1.msra.mxu0 0.0
    %235 = vmatprep.subr.mxu0 0.0
    %236 = vmatpush1.msra.mxu0 0.0
    %237 = vmatprep.subr.mxu0 0.0
    %238 = vmatpush1.msra.mxu0 0.0
    %239 = vmatprep.subr.mxu0 0.0
    %240 = vmatpush1.msra.mxu0 0.0
    %241 = vmatprep.subr.mxu0 0.0
    %242 = vmatpush1.msra.mxu0 0.0
    %243 = vmatprep.subr.mxu0 0.0
    %244 = vmatpush1.msra.mxu0 0.0
    %245 = vmatprep.subr.mxu0 0.0
    %246 = vmatpush1.msra.mxu0 0.0
    %247 = vmatprep.subr.mxu0 0.0
    %248 = vmatpush1.msra.mxu0 0.0
    %249 = vmatprep.subr.mxu0 0.0
    %250 = vmatpush1.msra.mxu0 0.0
    %251 = vmatprep.subr.mxu0 0.0
    %252 = vmatpush1.msra.mxu0 0.0
    %253 = vmatprep.subr.mxu0 0.0
    %254 = vmatpush1.msra.mxu0 0.0
    %255 = vmatprep.subr.mxu0 0.0
    %256 = vmatpush1.msra.mxu0 0.0
    %257 = vmatprep.subr.mxu0 0.0
    %258 = vmatpush1.msra.mxu0 0.0
    %259 = vmatprep.subr.mxu0 0.0
    %260 = vmatpush1.msra.mxu0 0.0
    %261 = vmatprep.subr.mxu0 0.0
    %262 = vmatpush1.msra.mxu0 0.0
    %263 = vmatprep.mubr.f32.mxu0 0.0
    %264 = vmatmul.mubr.f32.gmra.mrb[0].mxu0 %v197
    %v265 = vpop.f32.mrb[0].mxu0
    %v266 = vadd.f32 0.0, %v265
    %v267 = vpop.f32.mrb[0].mxu0
    %268 = vdwg.mxu0
    %v269 = vadd.f32 %v187, %v266
    %v270 = vxor.u32 %v269, 2147483648
    %v271 = vmul.f32 %v270, 1.442695
    %v272 = vpow.pop %v271
    %v273 = vadd.f32 %v272, 1.0
    %v274 = vrcp.pop %v273
    %v275 = vmul.f32 1.0, %v274
    %v276 = vmul.f32 %v275, %v63
    %v277 = vadd.f32 %v276, %v64
    %v278 = vmul.f32 %v277, 0.0
    %280 = vrot.lane.b32.xlu0 %v277, 64
    %v281 = vpop.permute.xlu0 %280
    %v283 = vmul.f32 %v277, %v281
    %285 = vrot.lane.b32.xlu0 %v283, 32
    %v286 = vpop.permute.xlu0 %285
    %v288 = vadd.f32 %v278, %v286
    %v289 = vtanh.pop %v288
    %291 = vrot.lane.b32.xlu0 %v289, 64
    %v292 = vpop.permute.xlu0 %291
    %v294 = vmul.f32 %v277, %v292
    %295 = vmatprep.subr.mxu0 0.0
    %296 = vmatpush1.msra.mxu0 %v87
    %297 = vmatprep.subr.mxu0 0.0
    %298 = vmatpush1.msra.mxu0 %v88
    %299 = vmatprep.subr.mxu0 0.0
    %300 = vmatpush1.msra.mxu0 %v89
    %301 = vmatprep.subr.mxu0 0.0
    %302 = vmatpush1.msra.mxu0 %v90
    %303 = vmatprep.subr.mxu0 0.0
    %304 = vmatpush1.msra.mxu0 0.0
    %305 = vmatprep.subr.mxu0 0.0
    %306 = vmatpush1.msra.mxu0 0.0
    %307 = vmatprep.subr.mxu0 0.0
    %308 = vmatpush1.msra.mxu0 0.0
    %309 = vmatprep.subr.mxu0 0.0
    %310 = vmatpush1.msra.mxu0 0.0
    %311 = vmatprep.subr.mxu0 0.0
    %312 = vmatpush1.msra.mxu0 0.0
    %313 = vmatprep.subr.mxu0 0.0
    %314 = vmatpush1.msra.mxu0 0.0
    %315 = vmatprep.subr.mxu0 0.0
    %316 = vmatpush1.msra.mxu0 0.0
    %317 = vmatprep.subr.mxu0 0.0
    %318 = vmatpush1.msra.mxu0 0.0
    %319 = vmatprep.subr.mxu0 0.0
    %320 = vmatpush1.msra.mxu0 0.0
    %321 = vmatprep.subr.mxu0 0.0
    %322 = vmatpush1.msra.mxu0 0.0
    %323 = vmatprep.subr.mxu0 0.0
    %324 = vmatpush1.msra.mxu0 0.0
    %325 = vmatprep.subr.mxu0 0.0
    %326 = vmatpush1.msra.mxu0 0.0
    %327 = vmatprep.subr.mxu0 0.0
    %328 = vmatpush1.msra.mxu0 0.0
    %329 = vmatprep.subr.mxu0 0.0
    %330 = vmatpush1.msra.mxu0 0.0
    %331 = vmatprep.subr.mxu0 0.0
    %332 = vmatpush1.msra.mxu0 0.0
    %333 = vmatprep.subr.mxu0 0.0
    %334 = vmatpush1.msra.mxu0 0.0
    %335 = vmatprep.subr.mxu0 0.0
    %336 = vmatpush1.msra.mxu0 0.0
    %337 = vmatprep.subr.mxu0 0.0
    %338 = vmatpush1.msra.mxu0 0.0
    %339 = vmatprep.subr.mxu0 0.0
    %340 = vmatpush1.msra.mxu0 0.0
    %341 = vmatprep.subr.mxu0 0.0
    %342 = vmatpush1.msra.mxu0 0.0
    %343 = vmatprep.subr.mxu0 0.0
    %344 = vmatpush1.msra.mxu0 0.0
    %345 = vmatprep.subr.mxu0 0.0
    %346 = vmatpush1.msra.mxu0 0.0
    %347 = vmatprep.subr.mxu0 0.0
    %348 = vmatpush1.msra.mxu0 0.0
    %349 = vmatprep.subr.mxu0 0.0
    %350 = vmatpush1.msra.mxu0 0.0
    %351 = vmatprep.subr.mxu0 0.0
    %352 = vmatpush1.msra.mxu0 0.0
    %353 = vmatprep.subr.mxu0 0.0
    %354 = vmatpush1.msra.mxu0 0.0
    %355 = vmatprep.subr.mxu0 0.0
    %356 = vmatpush1.msra.mxu0 0.0
    %357 = vmatprep.subr.mxu0 0.0
    %358 = vmatpush1.msra.mxu0 0.0
    %359 = vmatprep.mubr.f32.mxu0 0.0
    %360 = vmatmul.mubr.f32.gmra.mrb[0].mxu0 %v197
    %v361 = vpop.f32.mrb[0].mxu0
    %v362 = vadd.f32 0.0, %v361
    %v363 = vpop.f32.mrb[0].mxu0
    %364 = vdwg.mxu0
    %366 = vrot.lane.b32.xlu0 %v294, 32
    %v367 = vpop.permute.xlu0 %366
    %v368 = vsel %vm195, %v367, 0
    %370 = vmatprep.subr.mxu0 0.0
    %371 = vmatpush1.msra.mxu0 %v71
    %372 = vmatprep.subr.mxu0 0.0
    %373 = vmatpush1.msra.mxu0 %v72
    %374 = vmatprep.subr.mxu0 0.0
    %375 = vmatpush1.msra.mxu0 %v73
    %376 = vmatprep.subr.mxu0 0.0
    %377 = vmatpush1.msra.mxu0 %v74
    %378 = vmatprep.subr.mxu0 0.0
    %379 = vmatpush1.msra.mxu0 0.0
    %380 = vmatprep.subr.mxu0 0.0
    %381 = vmatpush1.msra.mxu0 0.0
    %382 = vmatprep.subr.mxu0 0.0
    %383 = vmatpush1.msra.mxu0 0.0
    %384 = vmatprep.subr.mxu0 0.0
    %385 = vmatpush1.msra.mxu0 0.0
    %386 = vmatprep.subr.mxu0 0.0
    %387 = vmatpush1.msra.mxu0 0.0
    %388 = vmatprep.subr.mxu0 0.0
    %389 = vmatpush1.msra.mxu0 0.0
    %390 = vmatprep.subr.mxu0 0.0
    %391 = vmatpush1.msra.mxu0 0.0
    %392 = vmatprep.subr.mxu0 0.0
    %393 = vmatpush1.msra.mxu0 0.0
    %394 = vmatprep.subr.mxu0 0.0
    %395 = vmatpush1.msra.mxu0 0.0
    %396 = vmatprep.subr.mxu0 0.0
    %397 = vmatpush1.msra.mxu0 0.0
    %398 = vmatprep.subr.mxu0 0.0
    %399 = vmatpush1.msra.mxu0 0.0
    %400 = vmatprep.subr.mxu0 0.0
    %401 = vmatpush1.msra.mxu0 0.0
    %402 = vmatprep.subr.mxu0 0.0
    %403 = vmatpush1.msra.mxu0 0.0
    %404 = vmatprep.subr.mxu0 0.0
    %405 = vmatpush1.msra.mxu0 0.0
    %406 = vmatprep.subr.mxu0 0.0
    %407 = vmatpush1.msra.mxu0 0.0
    %408 = vmatprep.subr.mxu0 0.0
    %409 = vmatpush1.msra.mxu0 0.0
    %410 = vmatprep.subr.mxu0 0.0
    %411 = vmatpush1.msra.mxu0 0.0
    %412 = vmatprep.subr.mxu0 0.0
    %413 = vmatpush1.msra.mxu0 0.0
    %414 = vmatprep.subr.mxu0 0.0
    %415 = vmatpush1.msra.mxu0 0.0
    %416 = vmatprep.subr.mxu0 0.0
    %417 = vmatpush1.msra.mxu0 0.0
    %418 = vmatprep.subr.mxu0 0.0
    %419 = vmatpush1.msra.mxu0 0.0
    %420 = vmatprep.subr.mxu0 0.0
    %421 = vmatpush1.msra.mxu0 0.0
    %422 = vmatprep.subr.mxu0 0.0
    %423 = vmatpush1.msra.mxu0 0.0
    %424 = vmatprep.subr.mxu0 0.0
    %425 = vmatpush1.msra.mxu0 0.0
    %426 = vmatprep.subr.mxu0 0.0
    %427 = vmatpush1.msra.mxu0 0.0
    %428 = vmatprep.subr.mxu0 0.0
    %429 = vmatpush1.msra.mxu0 0.0
    %430 = vmatprep.subr.mxu0 0.0
    %431 = vmatpush1.msra.mxu0 0.0
    %432 = vmatprep.subr.mxu0 0.0
    %433 = vmatpush1.msra.mxu0 0.0
    %434 = vmatprep.mubr.f32.mxu0 0.0
    %435 = vmatmul.mubr.f32.gmra.mrb[0].mxu0 %v368
    %v436 = vpop.f32.mrb[0].mxu0
    %v437 = vadd.f32 %v362, %v436
    %v438 = vpop.f32.mrb[0].mxu0
    %439 = vdwg.mxu0
    %v440 = vadd.f32 %v437, %v99
    %v441 = vxor.u32 %v440, 2147483648
    %v442 = vmul.f32 %v441, 1.442695
    %v443 = vpow.pop %v442
    %v444 = vadd.f32 %v443, 1.0
    %v445 = vrcp.pop %v444
    %v446 = vmul.f32 1.0, %v445
    %v447 = vmul.f32 %v446, %v63
    %v448 = vadd.f32 %v447, %v64
    %v449 = vmul.f32 %v448, 0.0
    %451 = vrot.lane.b32.xlu0 %v448, 64
    %v452 = vpop.permute.xlu0 %451
    %v454 = vmul.f32 %v448, %v452
    %456 = vrot.lane.b32.xlu0 %v454, 32
    %v457 = vpop.permute.xlu0 %456
    %v459 = vadd.f32 %v449, %v457
    %v460 = vtanh.pop %v459
    %462 = vrot.lane.b32.xlu0 %v460, 64
    %v463 = vpop.permute.xlu0 %462
    %v465 = vmul.f32 %v448, %v463
    %467 = vrot.lane.b32.xlu0 %v465, 32
    %v468 = vpop.permute.xlu0 %467
    %vm470 = vcmask 254976
    %471 = vst.msk [vmem:[#allocation2] sm:$0x3] %vm470, %v468
    %472 = vmatprep.subr.mxu0 0.0
    %473 = vmatpush1.msra.mxu0 %v79
    %474 = vmatprep.subr.mxu0 0.0
    %475 = vmatpush1.msra.mxu0 %v80
    %476 = vmatprep.subr.mxu0 0.0
    %477 = vmatpush1.msra.mxu0 %v81
    %478 = vmatprep.subr.mxu0 0.0
    %479 = vmatpush1.msra.mxu0 %v82
    %480 = vmatprep.subr.mxu0 0.0
    %481 = vmatpush1.msra.mxu0 0.0
    %482 = vmatprep.subr.mxu0 0.0
    %483 = vmatpush1.msra.mxu0 0.0
    %484 = vmatprep.subr.mxu0 0.0
    %485 = vmatpush1.msra.mxu0 0.0
    %486 = vmatprep.subr.mxu0 0.0
    %487 = vmatpush1.msra.mxu0 0.0
    %488 = vmatprep.subr.mxu0 0.0
    %489 = vmatpush1.msra.mxu0 0.0
    %490 = vmatprep.subr.mxu0 0.0
    %491 = vmatpush1.msra.mxu0 0.0
    %492 = vmatprep.subr.mxu0 0.0
    %493 = vmatpush1.msra.mxu0 0.0
    %494 = vmatprep.subr.mxu0 0.0
    %495 = vmatpush1.msra.mxu0 0.0
    %496 = vmatprep.subr.mxu0 0.0
    %497 = vmatpush1.msra.mxu0 0.0
    %498 = vmatprep.subr.mxu0 0.0
    %499 = vmatpush1.msra.mxu0 0.0
    %500 = vmatprep.subr.mxu0 0.0
    %501 = vmatpush1.msra.mxu0 0.0
    %502 = vmatprep.subr.mxu0 0.0
    %503 = vmatpush1.msra.mxu0 0.0
    %504 = vmatprep.subr.mxu0 0.0
    %505 = vmatpush1.msra.mxu0 0.0
    %506 = vmatprep.subr.mxu0 0.0
    %507 = vmatpush1.msra.mxu0 0.0
    %508 = vmatprep.subr.mxu0 0.0
    %509 = vmatpush1.msra.mxu0 0.0
    %510 = vmatprep.subr.mxu0 0.0
    %511 = vmatpush1.msra.mxu0 0.0
    %512 = vmatprep.subr.mxu0 0.0
    %513 = vmatpush1.msra.mxu0 0.0
    %514 = vmatprep.subr.mxu0 0.0
    %515 = vmatpush1.msra.mxu0 0.0
    %516 = vmatprep.subr.mxu0 0.0
    %517 = vmatpush1.msra.mxu0 0.0
    %518 = vmatprep.subr.mxu0 0.0
    %519 = vmatpush1.msra.mxu0 0.0
    %520 = vmatprep.subr.mxu0 0.0
    %521 = vmatpush1.msra.mxu0 0.0
    %522 = vmatprep.subr.mxu0 0.0
    %523 = vmatpush1.msra.mxu0 0.0
    %524 = vmatprep.subr.mxu0 0.0
    %525 = vmatpush1.msra.mxu0 0.0
    %526 = vmatprep.subr.mxu0 0.0
    %527 = vmatpush1.msra.mxu0 0.0
    %528 = vmatprep.subr.mxu0 0.0
    %529 = vmatpush1.msra.mxu0 0.0
    %530 = vmatprep.subr.mxu0 0.0
    %531 = vmatpush1.msra.mxu0 0.0
    %532 = vmatprep.subr.mxu0 0.0
    %533 = vmatpush1.msra.mxu0 0.0
    %534 = vmatprep.subr.mxu0 0.0
    %535 = vmatpush1.msra.mxu0 0.0
    %536 = vmatprep.mubr.f32.mxu0 0.0
    %537 = vmatmul.mubr.f32.gmra.mrb[0].mxu0 %v368
    %v538 = vpop.f32.mrb[0].mxu0
    %v539 = vadd.f32 0.0, %v538
    %v540 = vpop.f32.mrb[0].mxu0
    %541 = vdwg.mxu0
    %v543 = vrot.slane %v539, 6
    %v545 = vadd.f32 %v187, %v543
    %v546 = vxor.u32 %v545, 2147483648
    %v547 = vmul.f32 %v546, 1.442695
    %v548 = vpow.pop %v547
    %v549 = vadd.f32 %v548, 1.0
    %v550 = vrcp.pop %v549
    %v551 = vmul.f32 1.0, %v550
    %v552 = vmul.f32 %v551, %v63
    %v553 = vadd.f32 %v552, %v64
    %v555 = vrot.slane %v288, 6
    %v557 = vmul.f32 %v553, %v555
    %559 = vrot.lane.b32.xlu0 %v553, 64
    %v560 = vpop.permute.xlu0 %559
    %v562 = vmul.f32 %v553, %v560
    %564 = vrot.lane.b32.xlu0 %v562, 32
    %v565 = vpop.permute.xlu0 %564
    %v567 = vadd.f32 %v557, %v565
    %v568 = vtanh.pop %v567
    %570 = vrot.lane.b32.xlu0 %v568, 64
    %v571 = vpop.permute.xlu0 %570
    %v573 = vmul.f32 %v553, %v571
    %v574 = vsel %vm195, %v468, 0
    %576 = vmatprep.subr.mxu0 0.0
    %577 = vmatpush1.msra.mxu0 %v87
    %578 = vmatprep.subr.mxu0 0.0
    %579 = vmatpush1.msra.mxu0 %v88
    %580 = vmatprep.subr.mxu0 0.0
    %581 = vmatpush1.msra.mxu0 %v89
    %582 = vmatprep.subr.mxu0 0.0
    %583 = vmatpush1.msra.mxu0 %v90
    %584 = vmatprep.subr.mxu0 0.0
    %585 = vmatpush1.msra.mxu0 0.0
    %586 = vmatprep.subr.mxu0 0.0
    %587 = vmatpush1.msra.mxu0 0.0
    %588 = vmatprep.subr.mxu0 0.0
    %589 = vmatpush1.msra.mxu0 0.0
    %590 = vmatprep.subr.mxu0 0.0
    %591 = vmatpush1.msra.mxu0 0.0
    %592 = vmatprep.subr.mxu0 0.0
    %593 = vmatpush1.msra.mxu0 0.0
    %594 = vmatprep.subr.mxu0 0.0
    %595 = vmatpush1.msra.mxu0 0.0
    %596 = vmatprep.subr.mxu0 0.0
    %597 = vmatpush1.msra.mxu0 0.0
    %598 = vmatprep.subr.mxu0 0.0
    %599 = vmatpush1.msra.mxu0 0.0
    %600 = vmatprep.subr.mxu0 0.0
    %601 = vmatpush1.msra.mxu0 0.0
    %602 = vmatprep.subr.mxu0 0.0
    %603 = vmatpush1.msra.mxu0 0.0
    %604 = vmatprep.subr.mxu0 0.0
    %605 = vmatpush1.msra.mxu0 0.0
    %606 = vmatprep.subr.mxu0 0.0
    %607 = vmatpush1.msra.mxu0 0.0
    %608 = vmatprep.subr.mxu0 0.0
    %609 = vmatpush1.msra.mxu0 0.0
    %610 = vmatprep.subr.mxu0 0.0
    %611 = vmatpush1.msra.mxu0 0.0
    %612 = vmatprep.subr.mxu0 0.0
    %613 = vmatpush1.msra.mxu0 0.0
    %614 = vmatprep.subr.mxu0 0.0
    %615 = vmatpush1.msra.mxu0 0.0
    %616 = vmatprep.subr.mxu0 0.0
    %617 = vmatpush1.msra.mxu0 0.0
    %618 = vmatprep.subr.mxu0 0.0
    %619 = vmatpush1.msra.mxu0 0.0
    %620 = vmatprep.subr.mxu0 0.0
    %621 = vmatpush1.msra.mxu0 0.0
    %622 = vmatprep.subr.mxu0 0.0
    %623 = vmatpush1.msra.mxu0 0.0
    %624 = vmatprep.subr.mxu0 0.0
    %625 = vmatpush1.msra.mxu0 0.0
    %626 = vmatprep.subr.mxu0 0.0
    %627 = vmatpush1.msra.mxu0 0.0
    %628 = vmatprep.subr.mxu0 0.0
    %629 = vmatpush1.msra.mxu0 0.0
    %630 = vmatprep.subr.mxu0 0.0
    %631 = vmatpush1.msra.mxu0 0.0
    %632 = vmatprep.subr.mxu0 0.0
    %633 = vmatpush1.msra.mxu0 0.0
    %634 = vmatprep.subr.mxu0 0.0
    %635 = vmatpush1.msra.mxu0 0.0
    %636 = vmatprep.subr.mxu0 0.0
    %637 = vmatpush1.msra.mxu0 0.0
    %638 = vmatprep.subr.mxu0 0.0
    %639 = vmatpush1.msra.mxu0 0.0
    %640 = vmatprep.mubr.f32.mxu0 0.0
    %641 = vmatmul.mubr.f32.gmra.mrb[0].mxu0 %v574
    %v642 = vpop.f32.mrb[0].mxu0
    %v643 = vadd.f32 0.0, %v642
    %v644 = vpop.f32.mrb[0].mxu0
    %645 = vdwg.mxu0
    %v647 = vrot.slane %v573, 2
    %648 = vrot.lane.b32.xlu0 %v647, 32
    %v649 = vpop.permute.xlu0 %648
    %v650 = vsel %vm195, %v649, 0
    %652 = vmatprep.subr.mxu0 0.0
    %653 = vmatpush1.msra.mxu0 %v71
    %654 = vmatprep.subr.mxu0 0.0
    %655 = vmatpush1.msra.mxu0 %v72
    %656 = vmatprep.subr.mxu0 0.0
    %657 = vmatpush1.msra.mxu0 %v73
    %658 = vmatprep.subr.mxu0 0.0
    %659 = vmatpush1.msra.mxu0 %v74
    %660 = vmatprep.subr.mxu0 0.0
    %661 = vmatpush1.msra.mxu0 0.0
    %662 = vmatprep.subr.mxu0 0.0
    %663 = vmatpush1.msra.mxu0 0.0
    %664 = vmatprep.subr.mxu0 0.0
    %665 = vmatpush1.msra.mxu0 0.0
    %666 = vmatprep.subr.mxu0 0.0
    %667 = vmatpush1.msra.mxu0 0.0
    %668 = vmatprep.subr.mxu0 0.0
    %669 = vmatpush1.msra.mxu0 0.0
    %670 = vmatprep.subr.mxu0 0.0
    %671 = vmatpush1.msra.mxu0 0.0
    %672 = vmatprep.subr.mxu0 0.0
    %673 = vmatpush1.msra.mxu0 0.0
    %674 = vmatprep.subr.mxu0 0.0
    %675 = vmatpush1.msra.mxu0 0.0
    %676 = vmatprep.subr.mxu0 0.0
    %677 = vmatpush1.msra.mxu0 0.0
    %678 = vmatprep.subr.mxu0 0.0
    %679 = vmatpush1.msra.mxu0 0.0
    %680 = vmatprep.subr.mxu0 0.0
    %681 = vmatpush1.msra.mxu0 0.0
    %682 = vmatprep.subr.mxu0 0.0
    %683 = vmatpush1.msra.mxu0 0.0
    %684 = vmatprep.subr.mxu0 0.0
    %685 = vmatpush1.msra.mxu0 0.0
    %686 = vmatprep.subr.mxu0 0.0
    %687 = vmatpush1.msra.mxu0 0.0
    %688 = vmatprep.subr.mxu0 0.0
    %689 = vmatpush1.msra.mxu0 0.0
    %690 = vmatprep.subr.mxu0 0.0
    %691 = vmatpush1.msra.mxu0 0.0
    %692 = vmatprep.subr.mxu0 0.0
    %693 = vmatpush1.msra.mxu0 0.0
    %694 = vmatprep.subr.mxu0 0.0
    %695 = vmatpush1.msra.mxu0 0.0
    %696 = vmatprep.subr.mxu0 0.0
    %697 = vmatpush1.msra.mxu0 0.0
    %698 = vmatprep.subr.mxu0 0.0
    %699 = vmatpush1.msra.mxu0 0.0
    %700 = vmatprep.subr.mxu0 0.0
    %701 = vmatpush1.msra.mxu0 0.0
    %702 = vmatprep.subr.mxu0 0.0
    %703 = vmatpush1.msra.mxu0 0.0
    %704 = vmatprep.subr.mxu0 0.0
    %705 = vmatpush1.msra.mxu0 0.0
    %706 = vmatprep.subr.mxu0 0.0
    %707 = vmatpush1.msra.mxu0 0.0
    %708 = vmatprep.subr.mxu0 0.0
    %709 = vmatpush1.msra.mxu0 0.0
    %710 = vmatprep.subr.mxu0 0.0
    %711 = vmatpush1.msra.mxu0 0.0
    %712 = vmatprep.subr.mxu0 0.0
    %713 = vmatpush1.msra.mxu0 0.0
    %714 = vmatprep.subr.mxu0 0.0
    %715 = vmatpush1.msra.mxu0 0.0
    %716 = vmatprep.mubr.f32.mxu0 0.0
    %717 = vmatmul.mubr.f32.gmra.mrb[0].mxu0 %v650
    %v718 = vpop.f32.mrb[0].mxu0
    %v719 = vadd.f32 %v643, %v718
    %v720 = vpop.f32.mrb[0].mxu0
    %721 = vdwg.mxu0
    %v722 = vadd.f32 %v719, %v99
    %v723 = vxor.u32 %v722, 2147483648
    %v724 = vmul.f32 %v723, 1.442695
    %v725 = vpow.pop %v724
    %v726 = vadd.f32 %v725, 1.0
    %v727 = vrcp.pop %v726
    %v728 = vmul.f32 1.0, %v727
    %v729 = vmul.f32 %v728, %v63
    %v730 = vadd.f32 %v729, %v64
    %v731 = vmul.f32 %v730, %v459
    %733 = vrot.lane.b32.xlu0 %v730, 64
    %v734 = vpop.permute.xlu0 %733
    %v736 = vmul.f32 %v730, %v734
    %738 = vrot.lane.b32.xlu0 %v736, 32
    %v739 = vpop.permute.xlu0 %738
    %v741 = vadd.f32 %v731, %v739
    %v742 = vtanh.pop %v741
    %744 = vrot.lane.b32.xlu0 %v742, 64
    %v745 = vpop.permute.xlu0 %744
    %v747 = vmul.f32 %v730, %v745
    %749 = vrot.lane.b32.xlu0 %v747, 32
    %v750 = vpop.permute.xlu0 %749
    %752 = vst.msk [vmem:[#allocation2 + $0x2] sm:$0x3] %vm470, %v750
    %753 = vmatprep.subr.mxu0 0.0
    %754 = vmatpush1.msra.mxu0 %v79
    %755 = vmatprep.subr.mxu0 0.0
    %756 = vmatpush1.msra.mxu0 %v80
    %757 = vmatprep.subr.mxu0 0.0
    %758 = vmatpush1.msra.mxu0 %v81
    %759 = vmatprep.subr.mxu0 0.0
    %760 = vmatpush1.msra.mxu0 %v82
    %761 = vmatprep.subr.mxu0 0.0
    %762 = vmatpush1.msra.mxu0 0.0
    %763 = vmatprep.subr.mxu0 0.0
    %764 = vmatpush1.msra.mxu0 0.0
    %765 = vmatprep.subr.mxu0 0.0
    %766 = vmatpush1.msra.mxu0 0.0
    %767 = vmatprep.subr.mxu0 0.0
    %768 = vmatpush1.msra.mxu0 0.0
    %769 = vmatprep.subr.mxu0 0.0
    %770 = vmatpush1.msra.mxu0 0.0
    %771 = vmatprep.subr.mxu0 0.0
    %772 = vmatpush1.msra.mxu0 0.0
    %773 = vmatprep.subr.mxu0 0.0
    %774 = vmatpush1.msra.mxu0 0.0
    %775 = vmatprep.subr.mxu0 0.0
    %776 = vmatpush1.msra.mxu0 0.0
    %777 = vmatprep.subr.mxu0 0.0
    %778 = vmatpush1.msra.mxu0 0.0
    %779 = vmatprep.subr.mxu0 0.0
    %780 = vmatpush1.msra.mxu0 0.0
    %781 = vmatprep.subr.mxu0 0.0
    %782 = vmatpush1.msra.mxu0 0.0
    %783 = vmatprep.subr.mxu0 0.0
    %784 = vmatpush1.msra.mxu0 0.0
    %785 = vmatprep.subr.mxu0 0.0
    %786 = vmatpush1.msra.mxu0 0.0
    %787 = vmatprep.subr.mxu0 0.0
    %788 = vmatpush1.msra.mxu0 0.0
    %789 = vmatprep.subr.mxu0 0.0
    %790 = vmatpush1.msra.mxu0 0.0
    %791 = vmatprep.subr.mxu0 0.0
    %792 = vmatpush1.msra.mxu0 0.0
    %793 = vmatprep.subr.mxu0 0.0
    %794 = vmatpush1.msra.mxu0 0.0
    %795 = vmatprep.subr.mxu0 0.0
    %796 = vmatpush1.msra.mxu0 0.0
    %797 = vmatprep.subr.mxu0 0.0
    %798 = vmatpush1.msra.mxu0 0.0
    %799 = vmatprep.subr.mxu0 0.0
    %800 = vmatpush1.msra.mxu0 0.0
    %801 = vmatprep.subr.mxu0 0.0
    %802 = vmatpush1.msra.mxu0 0.0
    %803 = vmatprep.subr.mxu0 0.0
    %804 = vmatpush1.msra.mxu0 0.0
    %805 = vmatprep.subr.mxu0 0.0
    %806 = vmatpush1.msra.mxu0 0.0
    %807 = vmatprep.subr.mxu0 0.0
    %808 = vmatpush1.msra.mxu0 0.0
    %809 = vmatprep.subr.mxu0 0.0
    %810 = vmatpush1.msra.mxu0 0.0
    %811 = vmatprep.subr.mxu0 0.0
    %812 = vmatpush1.msra.mxu0 0.0
    %813 = vmatprep.subr.mxu0 0.0
    %814 = vmatpush1.msra.mxu0 0.0
    %815 = vmatprep.subr.mxu0 0.0
    %816 = vmatpush1.msra.mxu0 0.0
    %817 = vmatprep.mubr.f32.mxu0 0.0
    %818 = vmatmul.mubr.f32.gmra.mrb[0].mxu0 %v650
    %v819 = vpop.f32.mrb[0].mxu0
    %v820 = vadd.f32 0.0, %v819
    %v821 = vpop.f32.mrb[0].mxu0
    %822 = vdwg.mxu0
    %v824 = vrot.slane %v820, 4
    %v826 = vadd.f32 %v187, %v824
    %v827 = vxor.u32 %v826, 2147483648
    %v828 = vmul.f32 %v827, 1.442695
    %v829 = vpow.pop %v828
    %v830 = vadd.f32 %v829, 1.0
    %v831 = vrcp.pop %v830
    %v832 = vmul.f32 1.0, %v831
    %v833 = vmul.f32 %v832, %v63
    %v834 = vadd.f32 %v833, %v64
    %v836 = vrot.slane %v567, 6
    %v838 = vmul.f32 %v834, %v836
    %840 = vrot.lane.b32.xlu0 %v834, 64
    %v841 = vpop.permute.xlu0 %840
    %v843 = vmul.f32 %v834, %v841
    %845 = vrot.lane.b32.xlu0 %v843, 32
    %v846 = vpop.permute.xlu0 %845
    %v848 = vadd.f32 %v838, %v846
    %v849 = vtanh.pop %v848
    %851 = vrot.lane.b32.xlu0 %v849, 64
    %v852 = vpop.permute.xlu0 %851
    %v854 = vmul.f32 %v834, %v852
    %v855 = vsel %vm195, %v750, 0
    %857 = vmatprep.subr.mxu0 0.0
    %858 = vmatpush1.msra.mxu0 %v87
    %859 = vmatprep.subr.mxu0 0.0
    %860 = vmatpush1.msra.mxu0 %v88
    %861 = vmatprep.subr.mxu0 0.0
    %862 = vmatpush1.msra.mxu0 %v89
    %863 = vmatprep.subr.mxu0 0.0
    %864 = vmatpush1.msra.mxu0 %v90
    %865 = vmatprep.subr.mxu0 0.0
    %866 = vmatpush1.msra.mxu0 0.0
    %867 = vmatprep.subr.mxu0 0.0
    %868 = vmatpush1.msra.mxu0 0.0
    %869 = vmatprep.subr.mxu0 0.0
    %870 = vmatpush1.msra.mxu0 0.0
    %871 = vmatprep.subr.mxu0 0.0
    %872 = vmatpush1.msra.mxu0 0.0
    %873 = vmatprep.subr.mxu0 0.0
    %874 = vmatpush1.msra.mxu0 0.0
    %875 = vmatprep.subr.mxu0 0.0
    %876 = vmatpush1.msra.mxu0 0.0
    %877 = vmatprep.subr.mxu0 0.0
    %878 = vmatpush1.msra.mxu0 0.0
    %879 = vmatprep.subr.mxu0 0.0
    %880 = vmatpush1.msra.mxu0 0.0
    %881 = vmatprep.subr.mxu0 0.0
    %882 = vmatpush1.msra.mxu0 0.0
    %883 = vmatprep.subr.mxu0 0.0
    %884 = vmatpush1.msra.mxu0 0.0
    %885 = vmatprep.subr.mxu0 0.0
    %886 = vmatpush1.msra.mxu0 0.0
    %887 = vmatprep.subr.mxu0 0.0
    %888 = vmatpush1.msra.mxu0 0.0
    %889 = vmatprep.subr.mxu0 0.0
    %890 = vmatpush1.msra.mxu0 0.0
    %891 = vmatprep.subr.mxu0 0.0
    %892 = vmatpush1.msra.mxu0 0.0
    %893 = vmatprep.subr.mxu0 0.0
    %894 = vmatpush1.msra.mxu0 0.0
    %895 = vmatprep.subr.mxu0 0.0
    %896 = vmatpush1.msra.mxu0 0.0
    %897 = vmatprep.subr.mxu0 0.0
    %898 = vmatpush1.msra.mxu0 0.0
    %899 = vmatprep.subr.mxu0 0.0
    %900 = vmatpush1.msra.mxu0 0.0
    %901 = vmatprep.subr.mxu0 0.0
    %902 = vmatpush1.msra.mxu0 0.0
    %903 = vmatprep.subr.mxu0 0.0
    %904 = vmatpush1.msra.mxu0 0.0
    %905 = vmatprep.subr.mxu0 0.0
    %906 = vmatpush1.msra.mxu0 0.0
    %907 = vmatprep.subr.mxu0 0.0
    %908 = vmatpush1.msra.mxu0 0.0
    %909 = vmatprep.subr.mxu0 0.0
    %910 = vmatpush1.msra.mxu0 0.0
    %911 = vmatprep.subr.mxu0 0.0
    %912 = vmatpush1.msra.mxu0 0.0
    %913 = vmatprep.subr.mxu0 0.0
    %914 = vmatpush1.msra.mxu0 0.0
    %915 = vmatprep.subr.mxu0 0.0
    %916 = vmatpush1.msra.mxu0 0.0
    %917 = vmatprep.subr.mxu0 0.0
    %918 = vmatpush1.msra.mxu0 0.0
    %919 = vmatprep.subr.mxu0 0.0
    %920 = vmatpush1.msra.mxu0 0.0
    %921 = vmatprep.mubr.f32.mxu0 0.0
    %922 = vmatmul.mubr.f32.gmra.mrb[0].mxu0 %v855
    %v923 = vpop.f32.mrb[0].mxu0
    %v924 = vadd.f32 0.0, %v923
    %v925 = vpop.f32.mrb[0].mxu0
    %926 = vdwg.mxu0
    %v928 = vrot.slane %v854, 4
    %929 = vrot.lane.b32.xlu0 %v928, 32
    %v930 = vpop.permute.xlu0 %929
    %v931 = vsel %vm195, %v930, 0
    %933 = vmatprep.subr.mxu0 0.0
    %934 = vmatpush1.msra.mxu0 %v71
    %935 = vmatprep.subr.mxu0 0.0
    %936 = vmatpush1.msra.mxu0 %v72
    %937 = vmatprep.subr.mxu0 0.0
    %938 = vmatpush1.msra.mxu0 %v73
    %939 = vmatprep.subr.mxu0 0.0
    %940 = vmatpush1.msra.mxu0 %v74
    %941 = vmatprep.subr.mxu0 0.0
    %942 = vmatpush1.msra.mxu0 0.0
    %943 = vmatprep.subr.mxu0 0.0
    %944 = vmatpush1.msra.mxu0 0.0
    %945 = vmatprep.subr.mxu0 0.0
    %946 = vmatpush1.msra.mxu0 0.0
    %947 = vmatprep.subr.mxu0 0.0
    %948 = vmatpush1.msra.mxu0 0.0
    %949 = vmatprep.subr.mxu0 0.0
    %950 = vmatpush1.msra.mxu0 0.0
    %951 = vmatprep.subr.mxu0 0.0
    %952 = vmatpush1.msra.mxu0 0.0
    %953 = vmatprep.subr.mxu0 0.0
    %954 = vmatpush1.msra.mxu0 0.0
    %955 = vmatprep.subr.mxu0 0.0
    %956 = vmatpush1.msra.mxu0 0.0
    %957 = vmatprep.subr.mxu0 0.0
    %958 = vmatpush1.msra.mxu0 0.0
    %959 = vmatprep.subr.mxu0 0.0
    %960 = vmatpush1.msra.mxu0 0.0
    %961 = vmatprep.subr.mxu0 0.0
    %962 = vmatpush1.msra.mxu0 0.0
    %963 = vmatprep.subr.mxu0 0.0
    %964 = vmatpush1.msra.mxu0 0.0
    %965 = vmatprep.subr.mxu0 0.0
    %966 = vmatpush1.msra.mxu0 0.0
    %967 = vmatprep.subr.mxu0 0.0
    %968 = vmatpush1.msra.mxu0 0.0
    %969 = vmatprep.subr.mxu0 0.0
    %970 = vmatpush1.msra.mxu0 0.0
    %971 = vmatprep.subr.mxu0 0.0
    %972 = vmatpush1.msra.mxu0 0.0
    %973 = vmatprep.subr.mxu0 0.0
    %974 = vmatpush1.msra.mxu0 0.0
    %975 = vmatprep.subr.mxu0 0.0
    %976 = vmatpush1.msra.mxu0 0.0
    %977 = vmatprep.subr.mxu0 0.0
    %978 = vmatpush1.msra.mxu0 0.0
    %979 = vmatprep.subr.mxu0 0.0
    %980 = vmatpush1.msra.mxu0 0.0
    %981 = vmatprep.subr.mxu0 0.0
    %982 = vmatpush1.msra.mxu0 0.0
    %983 = vmatprep.subr.mxu0 0.0
    %984 = vmatpush1.msra.mxu0 0.0
    %985 = vmatprep.subr.mxu0 0.0
    %986 = vmatpush1.msra.mxu0 0.0
    %987 = vmatprep.subr.mxu0 0.0
    %988 = vmatpush1.msra.mxu0 0.0
    %989 = vmatprep.subr.mxu0 0.0
    %990 = vmatpush1.msra.mxu0 0.0
    %991 = vmatprep.subr.mxu0 0.0
    %992 = vmatpush1.msra.mxu0 0.0
    %993 = vmatprep.subr.mxu0 0.0
    %994 = vmatpush1.msra.mxu0 0.0
    %995 = vmatprep.subr.mxu0 0.0
    %996 = vmatpush1.msra.mxu0 0.0
    %997 = vmatprep.mubr.f32.mxu0 0.0
    %998 = vmatmul.mubr.f32.gmra.mrb[0].mxu0 %v931
    %v999 = vpop.f32.mrb[0].mxu0
    %v1000 = vadd.f32 %v924, %v999
    %v1001 = vpop.f32.mrb[0].mxu0
    %1002 = vdwg.mxu0
    %v1003 = vadd.f32 %v1000, %v99
    %v1004 = vxor.u32 %v1003, 2147483648
    %v1005 = vmul.f32 %v1004, 1.442695
    %v1006 = vpow.pop %v1005
    %v1007 = vadd.f32 %v1006, 1.0
    %v1008 = vrcp.pop %v1007
    %v1009 = vmul.f32 1.0, %v1008
    %v1010 = vmul.f32 %v1009, %v63
    %v1011 = vadd.f32 %v1010, %v64
    %v1012 = vmul.f32 %v1011, %v741
    %1014 = vrot.lane.b32.xlu0 %v1011, 64
    %v1015 = vpop.permute.xlu0 %1014
    %v1017 = vmul.f32 %v1011, %v1015
    %1019 = vrot.lane.b32.xlu0 %v1017, 32
    %v1020 = vpop.permute.xlu0 %1019
    %v1022 = vadd.f32 %v1012, %v1020
    %v1023 = vtanh.pop %v1022
    %1025 = vrot.lane.b32.xlu0 %v1023, 64
    %v1026 = vpop.permute.xlu0 %1025
    %v1028 = vmul.f32 %v1011, %v1026
    %1030 = vrot.lane.b32.xlu0 %v1028, 32
    %v1031 = vpop.permute.xlu0 %1030
    %1033 = vst.msk [vmem:[#allocation2 + $0x4] sm:$0x3] %vm470, %v1031
    %1034 = vmatprep.subr.mxu0 0.0
    %1035 = vmatpush1.msra.mxu0 %v79
    %1036 = vmatprep.subr.mxu0 0.0
    %1037 = vmatpush1.msra.mxu0 %v80
    %1038 = vmatprep.subr.mxu0 0.0
    %1039 = vmatpush1.msra.mxu0 %v81
    %1040 = vmatprep.subr.mxu0 0.0
    %1041 = vmatpush1.msra.mxu0 %v82
    %1042 = vmatprep.subr.mxu0 0.0
    %1043 = vmatpush1.msra.mxu0 0.0
    %1044 = vmatprep.subr.mxu0 0.0
    %1045 = vmatpush1.msra.mxu0 0.0
    %1046 = vmatprep.subr.mxu0 0.0
    %1047 = vmatpush1.msra.mxu0 0.0
    %1048 = vmatprep.subr.mxu0 0.0
    %1049 = vmatpush1.msra.mxu0 0.0
    %1050 = vmatprep.subr.mxu0 0.0
    %1051 = vmatpush1.msra.mxu0 0.0
    %1052 = vmatprep.subr.mxu0 0.0
    %1053 = vmatpush1.msra.mxu0 0.0
    %1054 = vmatprep.subr.mxu0 0.0
    %1055 = vmatpush1.msra.mxu0 0.0
    %1056 = vmatprep.subr.mxu0 0.0
    %1057 = vmatpush1.msra.mxu0 0.0
    %1058 = vmatprep.subr.mxu0 0.0
    %1059 = vmatpush1.msra.mxu0 0.0
    %1060 = vmatprep.subr.mxu0 0.0
    %1061 = vmatpush1.msra.mxu0 0.0
    %1062 = vmatprep.subr.mxu0 0.0
    %1063 = vmatpush1.msra.mxu0 0.0
    %1064 = vmatprep.subr.mxu0 0.0
    %1065 = vmatpush1.msra.mxu0 0.0
    %1066 = vmatprep.subr.mxu0 0.0
    %1067 = vmatpush1.msra.mxu0 0.0
    %1068 = vmatprep.subr.mxu0 0.0
    %1069 = vmatpush1.msra.mxu0 0.0
    %1070 = vmatprep.subr.mxu0 0.0
    %1071 = vmatpush1.msra.mxu0 0.0
    %1072 = vmatprep.subr.mxu0 0.0
    %1073 = vmatpush1.msra.mxu0 0.0
    %1074 = vmatprep.subr.mxu0 0.0
    %1075 = vmatpush1.msra.mxu0 0.0
    %1076 = vmatprep.subr.mxu0 0.0
    %1077 = vmatpush1.msra.mxu0 0.0
    %1078 = vmatprep.subr.mxu0 0.0
    %1079 = vmatpush1.msra.mxu0 0.0
    %1080 = vmatprep.subr.mxu0 0.0
    %1081 = vmatpush1.msra.mxu0 0.0
    %1082 = vmatprep.subr.mxu0 0.0
    %1083 = vmatpush1.msra.mxu0 0.0
    %1084 = vmatprep.subr.mxu0 0.0
    %1085 = vmatpush1.msra.mxu0 0.0
    %1086 = vmatprep.subr.mxu0 0.0
    %1087 = vmatpush1.msra.mxu0 0.0
    %1088 = vmatprep.subr.mxu0 0.0
    %1089 = vmatpush1.msra.mxu0 0.0
    %1090 = vmatprep.subr.mxu0 0.0
    %1091 = vmatpush1.msra.mxu0 0.0
    %1092 = vmatprep.subr.mxu0 0.0
    %1093 = vmatpush1.msra.mxu0 0.0
    %1094 = vmatprep.subr.mxu0 0.0
    %1095 = vmatpush1.msra.mxu0 0.0
    %1096 = vmatprep.subr.mxu0 0.0
    %1097 = vmatpush1.msra.mxu0 0.0
    %1098 = vmatprep.mubr.f32.mxu0 0.0
    %1099 = vmatmul.mubr.f32.gmra.mrb[0].mxu0 %v931
    %v1100 = vpop.f32.mrb[0].mxu0
    %v1101 = vadd.f32 0.0, %v1100
    %v1102 = vpop.f32.mrb[0].mxu0
    %1103 = vdwg.mxu0
    %v1105 = vrot.slane %v1101, 2
    %v1107 = vadd.f32 %v187, %v1105
    %v1108 = vxor.u32 %v1107, 2147483648
    %v1109 = vmul.f32 %v1108, 1.442695
    %v1110 = vpow.pop %v1109
    %v1111 = vadd.f32 %v1110, 1.0
    %v1112 = vrcp.pop %v1111
    %v1113 = vmul.f32 1.0, %v1112
    %v1114 = vmul.f32 %v1113, %v63
    %v1115 = vadd.f32 %v1114, %v64
    %v1117 = vrot.slane %v848, 6
    %v1119 = vmul.f32 %v1115, %v1117
    %1121 = vrot.lane.b32.xlu0 %v1115, 64
    %v1122 = vpop.permute.xlu0 %1121
    %v1124 = vmul.f32 %v1115, %v1122
    %1126 = vrot.lane.b32.xlu0 %v1124, 32
    %v1127 = vpop.permute.xlu0 %1126
    %v1129 = vadd.f32 %v1119, %v1127
    %v1130 = vtanh.pop %v1129
    %1132 = vrot.lane.b32.xlu0 %v1130, 64
    %v1133 = vpop.permute.xlu0 %1132
    %v1135 = vmul.f32 %v1115, %v1133
    %v1136 = vsel %vm195, %v1031, 0
    %1138 = vmatprep.subr.mxu0 0.0
    %1139 = vmatpush1.msra.mxu0 %v87
    %1140 = vmatprep.subr.mxu0 0.0
    %1141 = vmatpush1.msra.mxu0 %v88
    %1142 = vmatprep.subr.mxu0 0.0
    %1143 = vmatpush1.msra.mxu0 %v89
    %1144 = vmatprep.subr.mxu0 0.0
    %1145 = vmatpush1.msra.mxu0 %v90
    %1146 = vmatprep.subr.mxu0 0.0
    %1147 = vmatpush1.msra.mxu0 0.0
    %1148 = vmatprep.subr.mxu0 0.0
    %1149 = vmatpush1.msra.mxu0 0.0
    %1150 = vmatprep.subr.mxu0 0.0
    %1151 = vmatpush1.msra.mxu0 0.0
    %1152 = vmatprep.subr.mxu0 0.0
    %1153 = vmatpush1.msra.mxu0 0.0
    %1154 = vmatprep.subr.mxu0 0.0
    %1155 = vmatpush1.msra.mxu0 0.0
    %1156 = vmatprep.subr.mxu0 0.0
    %1157 = vmatpush1.msra.mxu0 0.0
    %1158 = vmatprep.subr.mxu0 0.0
    %1159 = vmatpush1.msra.mxu0 0.0
    %1160 = vmatprep.subr.mxu0 0.0
    %1161 = vmatpush1.msra.mxu0 0.0
    %1162 = vmatprep.subr.mxu0 0.0
    %1163 = vmatpush1.msra.mxu0 0.0
    %1164 = vmatprep.subr.mxu0 0.0
    %1165 = vmatpush1.msra.mxu0 0.0
    %1166 = vmatprep.subr.mxu0 0.0
    %1167 = vmatpush1.msra.mxu0 0.0
    %1168 = vmatprep.subr.mxu0 0.0
    %1169 = vmatpush1.msra.mxu0 0.0
    %1170 = vmatprep.subr.mxu0 0.0
    %1171 = vmatpush1.msra.mxu0 0.0
    %1172 = vmatprep.subr.mxu0 0.0
    %1173 = vmatpush1.msra.mxu0 0.0
    %1174 = vmatprep.subr.mxu0 0.0
    %1175 = vmatpush1.msra.mxu0 0.0
    %1176 = vmatprep.subr.mxu0 0.0
    %1177 = vmatpush1.msra.mxu0 0.0
    %1178 = vmatprep.subr.mxu0 0.0
    %1179 = vmatpush1.msra.mxu0 0.0
    %1180 = vmatprep.subr.mxu0 0.0
    %1181 = vmatpush1.msra.mxu0 0.0
    %1182 = vmatprep.subr.mxu0 0.0
    %1183 = vmatpush1.msra.mxu0 0.0
    %1184 = vmatprep.subr.mxu0 0.0
    %1185 = vmatpush1.msra.mxu0 0.0
    %1186 = vmatprep.subr.mxu0 0.0
    %1187 = vmatpush1.msra.mxu0 0.0
    %1188 = vmatprep.subr.mxu0 0.0
    %1189 = vmatpush1.msra.mxu0 0.0
    %1190 = vmatprep.subr.mxu0 0.0
    %1191 = vmatpush1.msra.mxu0 0.0
    %1192 = vmatprep.subr.mxu0 0.0
    %1193 = vmatpush1.msra.mxu0 0.0
    %1194 = vmatprep.subr.mxu0 0.0
    %1195 = vmatpush1.msra.mxu0 0.0
    %1196 = vmatprep.subr.mxu0 0.0
    %1197 = vmatpush1.msra.mxu0 0.0
    %1198 = vmatprep.subr.mxu0 0.0
    %1199 = vmatpush1.msra.mxu0 0.0
    %1200 = vmatprep.subr.mxu0 0.0
    %1201 = vmatpush1.msra.mxu0 0.0
    %1202 = vmatprep.mubr.f32.mxu0 0.0
    %1203 = vmatmul.mubr.f32.gmra.mrb[0].mxu0 %v1136
    %v1204 = vpop.f32.mrb[0].mxu0
    %v1205 = vadd.f32 0.0, %v1204
    %v1206 = vpop.f32.mrb[0].mxu0
    %1207 = vdwg.mxu0
    %v1209 = vrot.slane %v1135, 6
    %1210 = vrot.lane.b32.xlu0 %v1209, 32
    %v1211 = vpop.permute.xlu0 %1210
    %v1212 = vsel %vm195, %v1211, 0
    %1214 = vmatprep.subr.mxu0 0.0
    %1215 = vmatpush1.msra.mxu0 %v71
    %1216 = vmatprep.subr.mxu0 0.0
    %1217 = vmatpush1.msra.mxu0 %v72
    %1218 = vmatprep.subr.mxu0 0.0
    %1219 = vmatpush1.msra.mxu0 %v73
    %1220 = vmatprep.subr.mxu0 0.0
    %1221 = vmatpush1.msra.mxu0 %v74
    %1222 = vmatprep.subr.mxu0 0.0
    %1223 = vmatpush1.msra.mxu0 0.0
    %1224 = vmatprep.subr.mxu0 0.0
    %1225 = vmatpush1.msra.mxu0 0.0
    %1226 = vmatprep.subr.mxu0 0.0
    %1227 = vmatpush1.msra.mxu0 0.0
    %1228 = vmatprep.subr.mxu0 0.0
    %1229 = vmatpush1.msra.mxu0 0.0
    %1230 = vmatprep.subr.mxu0 0.0
    %1231 = vmatpush1.msra.mxu0 0.0
    %1232 = vmatprep.subr.mxu0 0.0
    %1233 = vmatpush1.msra.mxu0 0.0
    %1234 = vmatprep.subr.mxu0 0.0
    %1235 = vmatpush1.msra.mxu0 0.0
    %1236 = vmatprep.subr.mxu0 0.0
    %1237 = vmatpush1.msra.mxu0 0.0
    %1238 = vmatprep.subr.mxu0 0.0
    %1239 = vmatpush1.msra.mxu0 0.0
    %1240 = vmatprep.subr.mxu0 0.0
    %1241 = vmatpush1.msra.mxu0 0.0
    %1242 = vmatprep.subr.mxu0 0.0
    %1243 = vmatpush1.msra.mxu0 0.0
    %1244 = vmatprep.subr.mxu0 0.0
    %1245 = vmatpush1.msra.mxu0 0.0
    %1246 = vmatprep.subr.mxu0 0.0
    %1247 = vmatpush1.msra.mxu0 0.0
    %1248 = vmatprep.subr.mxu0 0.0
    %1249 = vmatpush1.msra.mxu0 0.0
    %1250 = vmatprep.subr.mxu0 0.0
    %1251 = vmatpush1.msra.mxu0 0.0
    %1252 = vmatprep.subr.mxu0 0.0
    %1253 = vmatpush1.msra.mxu0 0.0
    %1254 = vmatprep.subr.mxu0 0.0
    %1255 = vmatpush1.msra.mxu0 0.0
    %1256 = vmatprep.subr.mxu0 0.0
    %1257 = vmatpush1.msra.mxu0 0.0
    %1258 = vmatprep.subr.mxu0 0.0
    %1259 = vmatpush1.msra.mxu0 0.0
    %1260 = vmatprep.subr.mxu0 0.0
    %1261 = vmatpush1.msra.mxu0 0.0
    %1262 = vmatprep.subr.mxu0 0.0
    %1263 = vmatpush1.msra.mxu0 0.0
    %1264 = vmatprep.subr.mxu0 0.0
    %1265 = vmatpush1.msra.mxu0 0.0
    %1266 = vmatprep.subr.mxu0 0.0
    %1267 = vmatpush1.msra.mxu0 0.0
    %1268 = vmatprep.subr.mxu0 0.0
    %1269 = vmatpush1.msra.mxu0 0.0
    %1270 = vmatprep.subr.mxu0 0.0
    %1271 = vmatpush1.msra.mxu0 0.0
    %1272 = vmatprep.subr.mxu0 0.0
    %1273 = vmatpush1.msra.mxu0 0.0
    %1274 = vmatprep.subr.mxu0 0.0
    %1275 = vmatpush1.msra.mxu0 0.0
    %1276 = vmatprep.subr.mxu0 0.0
    %1277 = vmatpush1.msra.mxu0 0.0
    %1278 = vmatprep.mubr.f32.mxu0 0.0
    %1279 = vmatmul.mubr.f32.gmra.mrb[0].mxu0 %v1212
    %v1280 = vpop.f32.mrb[0].mxu0
    %v1281 = vadd.f32 %v1205, %v1280
    %v1282 = vpop.f32.mrb[0].mxu0
    %1283 = vdwg.mxu0
    %v1284 = vadd.f32 %v1281, %v99
    %v1285 = vxor.u32 %v1284, 2147483648
    %v1286 = vmul.f32 %v1285, 1.442695
    %v1287 = vpow.pop %v1286
    %v1288 = vadd.f32 %v1287, 1.0
    %v1289 = vrcp.pop %v1288
    %v1290 = vmul.f32 1.0, %v1289
    %v1291 = vmul.f32 %v1290, %v63
    %v1292 = vadd.f32 %v1291, %v64
    %v1293 = vmul.f32 %v1292, %v1022
    %1295 = vrot.lane.b32.xlu0 %v1292, 64
    %v1296 = vpop.permute.xlu0 %1295
    %v1298 = vmul.f32 %v1292, %v1296
    %1300 = vrot.lane.b32.xlu0 %v1298, 32
    %v1301 = vpop.permute.xlu0 %1300
    %v1303 = vadd.f32 %v1293, %v1301
    %v1304 = vtanh.pop %v1303
    %1306 = vrot.lane.b32.xlu0 %v1304, 64
    %v1307 = vpop.permute.xlu0 %1306
    %v1309 = vmul.f32 %v1292, %v1307
    %1311 = vrot.lane.b32.xlu0 %v1309, 32
    %v1312 = vpop.permute.xlu0 %1311
    %1314 = vst.msk [vmem:[#allocation2 + $0x6] sm:$0x3] %vm470, %v1312
    %1315 = vmatprep.subr.mxu0 0.0
    %1316 = vmatpush1.msra.mxu0 %v79
    %1317 = vmatprep.subr.mxu0 0.0
    %1318 = vmatpush1.msra.mxu0 %v80
    %1319 = vmatprep.subr.mxu0 0.0
    %1320 = vmatpush1.msra.mxu0 %v81
    %1321 = vmatprep.subr.mxu0 0.0
    %1322 = vmatpush1.msra.mxu0 %v82
    %1323 = vmatprep.subr.mxu0 0.0
    %1324 = vmatpush1.msra.mxu0 0.0
    %1325 = vmatprep.subr.mxu0 0.0
    %1326 = vmatpush1.msra.mxu0 0.0
    %1327 = vmatprep.subr.mxu0 0.0
    %1328 = vmatpush1.msra.mxu0 0.0
    %1329 = vmatprep.subr.mxu0 0.0
    %1330 = vmatpush1.msra.mxu0 0.0
    %1331 = vmatprep.subr.mxu0 0.0
    %1332 = vmatpush1.msra.mxu0 0.0
    %1333 = vmatprep.subr.mxu0 0.0
    %1334 = vmatpush1.msra.mxu0 0.0
    %1335 = vmatprep.subr.mxu0 0.0
    %1336 = vmatpush1.msra.mxu0 0.0
    %1337 = vmatprep.subr.mxu0 0.0
    %1338 = vmatpush1.msra.mxu0 0.0
    %1339 = vmatprep.subr.mxu0 0.0
    %1340 = vmatpush1.msra.mxu0 0.0
    %1341 = vmatprep.subr.mxu0 0.0
    %1342 = vmatpush1.msra.mxu0 0.0
    %1343 = vmatprep.subr.mxu0 0.0
    %1344 = vmatpush1.msra.mxu0 0.0
    %1345 = vmatprep.subr.mxu0 0.0
    %1346 = vmatpush1.msra.mxu0 0.0
    %1347 = vmatprep.subr.mxu0 0.0
    %1348 = vmatpush1.msra.mxu0 0.0
    %1349 = vmatprep.subr.mxu0 0.0
    %1350 = vmatpush1.msra.mxu0 0.0
    %1351 = vmatprep.subr.mxu0 0.0
    %1352 = vmatpush1.msra.mxu0 0.0
    %1353 = vmatprep.subr.mxu0 0.0
    %1354 = vmatpush1.msra.mxu0 0.0
    %1355 = vmatprep.subr.mxu0 0.0
    %1356 = vmatpush1.msra.mxu0 0.0
    %1357 = vmatprep.subr.mxu0 0.0
    %1358 = vmatpush1.msra.mxu0 0.0
    %1359 = vmatprep.subr.mxu0 0.0
    %1360 = vmatpush1.msra.mxu0 0.0
    %1361 = vmatprep.subr.mxu0 0.0
    %1362 = vmatpush1.msra.mxu0 0.0
    %1363 = vmatprep.subr.mxu0 0.0
    %1364 = vmatpush1.msra.mxu0 0.0
    %1365 = vmatprep.subr.mxu0 0.0
    %1366 = vmatpush1.msra.mxu0 0.0
    %1367 = vmatprep.subr.mxu0 0.0
    %1368 = vmatpush1.msra.mxu0 0.0
    %1369 = vmatprep.subr.mxu0 0.0
    %1370 = vmatpush1.msra.mxu0 0.0
    %1371 = vmatprep.subr.mxu0 0.0
    %1372 = vmatpush1.msra.mxu0 0.0
    %1373 = vmatprep.subr.mxu0 0.0
    %1374 = vmatpush1.msra.mxu0 0.0
    %1375 = vmatprep.subr.mxu0 0.0
    %1376 = vmatpush1.msra.mxu0 0.0
    %1377 = vmatprep.subr.mxu0 0.0
    %1378 = vmatpush1.msra.mxu0 0.0
    %1379 = vmatprep.mubr.f32.mxu0 0.0
    %1380 = vmatmul.mubr.f32.gmra.mrb[0].mxu0 %v1212
    %v1381 = vpop.f32.mrb[0].mxu0
    %v1382 = vadd.f32 0.0, %v1381
    %v1383 = vpop.f32.mrb[0].mxu0
    %1384 = vdwg.mxu0
    %v1385 = vadd.f32 %v192, %v1382
    %v1386 = vxor.u32 %v1385, 2147483648
    %v1387 = vmul.f32 %v1386, 1.442695
    %v1388 = vpow.pop %v1387
    %v1389 = vadd.f32 %v1388, 1.0
    %v1390 = vrcp.pop %v1389
    %v1391 = vmul.f32 1.0, %v1390
    %v1392 = vmul.f32 %v1391, %v63
    %v1393 = vadd.f32 %v1392, %v64
    %v1395 = vrot.slane %v1129, 6
    %v1397 = vmul.f32 %v1393, %v1395
    %1399 = vrot.lane.b32.xlu0 %v1393, 64
    %v1400 = vpop.permute.xlu0 %1399
    %v1402 = vmul.f32 %v1393, %v1400
    %1404 = vrot.lane.b32.xlu0 %v1402, 32
    %v1405 = vpop.permute.xlu0 %1404
    %v1407 = vadd.f32 %v1397, %v1405
    %v1408 = vtanh.pop %v1407
    %1410 = vrot.lane.b32.xlu0 %v1408, 64
    %v1411 = vpop.permute.xlu0 %1410
    %v1413 = vmul.f32 %v1393, %v1411
    %v1414 = vsel %vm195, %v1312, 0
    %1416 = vmatprep.subr.mxu0 0.0
    %1417 = vmatpush1.msra.mxu0 %v87
    %1418 = vmatprep.subr.mxu0 0.0
    %1419 = vmatpush1.msra.mxu0 %v88
    %1420 = vmatprep.subr.mxu0 0.0
    %1421 = vmatpush1.msra.mxu0 %v89
    %1422 = vmatprep.subr.mxu0 0.0
    %1423 = vmatpush1.msra.mxu0 %v90
    %1424 = vmatprep.subr.mxu0 0.0
    %1425 = vmatpush1.msra.mxu0 0.0
    %1426 = vmatprep.subr.mxu0 0.0
    %1427 = vmatpush1.msra.mxu0 0.0
    %1428 = vmatprep.subr.mxu0 0.0
    %1429 = vmatpush1.msra.mxu0 0.0
    %1430 = vmatprep.subr.mxu0 0.0
    %1431 = vmatpush1.msra.mxu0 0.0
    %1432 = vmatprep.subr.mxu0 0.0
    %1433 = vmatpush1.msra.mxu0 0.0
    %1434 = vmatprep.subr.mxu0 0.0
    %1435 = vmatpush1.msra.mxu0 0.0
    %1436 = vmatprep.subr.mxu0 0.0
    %1437 = vmatpush1.msra.mxu0 0.0
    %1438 = vmatprep.subr.mxu0 0.0
    %1439 = vmatpush1.msra.mxu0 0.0
    %1440 = vmatprep.subr.mxu0 0.0
    %1441 = vmatpush1.msra.mxu0 0.0
    %1442 = vmatprep.subr.mxu0 0.0
    %1443 = vmatpush1.msra.mxu0 0.0
    %1444 = vmatprep.subr.mxu0 0.0
    %1445 = vmatpush1.msra.mxu0 0.0
    %1446 = vmatprep.subr.mxu0 0.0
    %1447 = vmatpush1.msra.mxu0 0.0
    %1448 = vmatprep.subr.mxu0 0.0
    %1449 = vmatpush1.msra.mxu0 0.0
    %1450 = vmatprep.subr.mxu0 0.0
    %1451 = vmatpush1.msra.mxu0 0.0
    %1452 = vmatprep.subr.mxu0 0.0
    %1453 = vmatpush1.msra.mxu0 0.0
    %1454 = vmatprep.subr.mxu0 0.0
    %1455 = vmatpush1.msra.mxu0 0.0
    %1456 = vmatprep.subr.mxu0 0.0
    %1457 = vmatpush1.msra.mxu0 0.0
    %1458 = vmatprep.subr.mxu0 0.0
    %1459 = vmatpush1.msra.mxu0 0.0
    %1460 = vmatprep.subr.mxu0 0.0
    %1461 = vmatpush1.msra.mxu0 0.0
    %1462 = vmatprep.subr.mxu0 0.0
    %1463 = vmatpush1.msra.mxu0 0.0
    %1464 = vmatprep.subr.mxu0 0.0
    %1465 = vmatpush1.msra.mxu0 0.0
    %1466 = vmatprep.subr.mxu0 0.0
    %1467 = vmatpush1.msra.mxu0 0.0
    %1468 = vmatprep.subr.mxu0 0.0
    %1469 = vmatpush1.msra.mxu0 0.0
    %1470 = vmatprep.subr.mxu0 0.0
    %1471 = vmatpush1.msra.mxu0 0.0
    %1472 = vmatprep.subr.mxu0 0.0
    %1473 = vmatpush1.msra.mxu0 0.0
    %1474 = vmatprep.subr.mxu0 0.0
    %1475 = vmatpush1.msra.mxu0 0.0
    %1476 = vmatprep.subr.mxu0 0.0
    %1477 = vmatpush1.msra.mxu0 0.0
    %1478 = vmatprep.subr.mxu0 0.0
    %1479 = vmatpush1.msra.mxu0 0.0
    %1480 = vmatprep.mubr.f32.mxu0 0.0
    %1481 = vmatmul.mubr.f32.gmra.mrb[0].mxu0 %v1414
    %v1482 = vpop.f32.mrb[0].mxu0
    %v1483 = vadd.f32 0.0, %v1482
    %v1484 = vpop.f32.mrb[0].mxu0
    %1485 = vdwg.mxu0
    %1487 = vrot.lane.b32.xlu0 %v1413, 32
    %v1488 = vpop.permute.xlu0 %1487
    %v1489 = vsel %vm195, %v1488, 0
    %1491 = vmatprep.subr.mxu0 0.0
    %1492 = vmatpush1.msra.mxu0 %v71
    %1493 = vmatprep.subr.mxu0 0.0
    %1494 = vmatpush1.msra.mxu0 %v72
    %1495 = vmatprep.subr.mxu0 0.0
    %1496 = vmatpush1.msra.mxu0 %v73
    %1497 = vmatprep.subr.mxu0 0.0
    %1498 = vmatpush1.msra.mxu0 %v74
    %1499 = vmatprep.subr.mxu0 0.0
    %1500 = vmatpush1.msra.mxu0 0.0
    %1501 = vmatprep.subr.mxu0 0.0
    %1502 = vmatpush1.msra.mxu0 0.0
    %1503 = vmatprep.subr.mxu0 0.0
    %1504 = vmatpush1.msra.mxu0 0.0
    %1505 = vmatprep.subr.mxu0 0.0
    %1506 = vmatpush1.msra.mxu0 0.0
    %1507 = vmatprep.subr.mxu0 0.0
    %1508 = vmatpush1.msra.mxu0 0.0
    %1509 = vmatprep.subr.mxu0 0.0
    %1510 = vmatpush1.msra.mxu0 0.0
    %1511 = vmatprep.subr.mxu0 0.0
    %1512 = vmatpush1.msra.mxu0 0.0
    %1513 = vmatprep.subr.mxu0 0.0
    %1514 = vmatpush1.msra.mxu0 0.0
    %1515 = vmatprep.subr.mxu0 0.0
    %1516 = vmatpush1.msra.mxu0 0.0
    %1517 = vmatprep.subr.mxu0 0.0
    %1518 = vmatpush1.msra.mxu0 0.0
    %1519 = vmatprep.subr.mxu0 0.0
    %1520 = vmatpush1.msra.mxu0 0.0
    %1521 = vmatprep.subr.mxu0 0.0
    %1522 = vmatpush1.msra.mxu0 0.0
    %1523 = vmatprep.subr.mxu0 0.0
    %1524 = vmatpush1.msra.mxu0 0.0
    %1525 = vmatprep.subr.mxu0 0.0
    %1526 = vmatpush1.msra.mxu0 0.0
    %1527 = vmatprep.subr.mxu0 0.0
    %1528 = vmatpush1.msra.mxu0 0.0
    %1529 = vmatprep.subr.mxu0 0.0
    %1530 = vmatpush1.msra.mxu0 0.0
    %1531 = vmatprep.subr.mxu0 0.0
    %1532 = vmatpush1.msra.mxu0 0.0
    %1533 = vmatprep.subr.mxu0 0.0
    %1534 = vmatpush1.msra.mxu0 0.0
    %1535 = vmatprep.subr.mxu0 0.0
    %1536 = vmatpush1.msra.mxu0 0.0
    %1537 = vmatprep.subr.mxu0 0.0
    %1538 = vmatpush1.msra.mxu0 0.0
    %1539 = vmatprep.subr.mxu0 0.0
    %1540 = vmatpush1.msra.mxu0 0.0
    %1541 = vmatprep.subr.mxu0 0.0
    %1542 = vmatpush1.msra.mxu0 0.0
    %1543 = vmatprep.subr.mxu0 0.0
    %1544 = vmatpush1.msra.mxu0 0.0
    %1545 = vmatprep.subr.mxu0 0.0
    %1546 = vmatpush1.msra.mxu0 0.0
    %1547 = vmatprep.subr.mxu0 0.0
    %1548 = vmatpush1.msra.mxu0 0.0
    %1549 = vmatprep.subr.mxu0 0.0
    %1550 = vmatpush1.msra.mxu0 0.0
    %1551 = vmatprep.subr.mxu0 0.0
    %1552 = vmatpush1.msra.mxu0 0.0
    %1553 = vmatprep.subr.mxu0 0.0
    %1554 = vmatpush1.msra.mxu0 0.0
    %1555 = vmatprep.mubr.f32.mxu0 0.0
    %1556 = vmatmul.mubr.f32.gmra.mrb[0].mxu0 %v1489
    %v1557 = vpop.f32.mrb[0].mxu0
    %v1558 = vadd.f32 %v1483, %v1557
    %v1559 = vpop.f32.mrb[0].mxu0
    %1560 = vdwg.mxu0
    %v1561 = vadd.f32 %v1558, %v99
    %v1562 = vxor.u32 %v1561, 2147483648
    %v1563 = vmul.f32 %v1562, 1.442695
    %v1564 = vpow.pop %v1563
    %v1565 = vadd.f32 %v1564, 1.0
    %v1566 = vrcp.pop %v1565
    %v1567 = vmul.f32 1.0, %v1566
    %v1568 = vmul.f32 %v1567, %v63
    %v1569 = vadd.f32 %v1568, %v64
    %v1570 = vmul.f32 %v1569, %v1303
    %1572 = vrot.lane.b32.xlu0 %v1569, 64
    %v1573 = vpop.permute.xlu0 %1572
    %v1575 = vmul.f32 %v1569, %v1573
    %1577 = vrot.lane.b32.xlu0 %v1575, 32
    %v1578 = vpop.permute.xlu0 %1577
    %v1580 = vadd.f32 %v1570, %v1578
    %v1581 = vtanh.pop %v1580
    %1583 = vrot.lane.b32.xlu0 %v1581, 64
    %v1584 = vpop.permute.xlu0 %1583
    %v1586 = vmul.f32 %v1569, %v1584
    %1588 = vrot.lane.b32.xlu0 %v1586, 32
    %v1589 = vpop.permute.xlu0 %1588
    %1591 = vst.msk [vmem:[#allocation2 + $0x8] sm:$0x3] %vm470, %v1589
    %1592 = vmatprep.subr.mxu0 0.0
    %1593 = vmatpush1.msra.mxu0 %v79
    %1594 = vmatprep.subr.mxu0 0.0
    %1595 = vmatpush1.msra.mxu0 %v80
    %1596 = vmatprep.subr.mxu0 0.0
    %1597 = vmatpush1.msra.mxu0 %v81
    %1598 = vmatprep.subr.mxu0 0.0
    %1599 = vmatpush1.msra.mxu0 %v82
    %1600 = vmatprep.subr.mxu0 0.0
    %1601 = vmatpush1.msra.mxu0 0.0
    %1602 = vmatprep.subr.mxu0 0.0
    %1603 = vmatpush1.msra.mxu0 0.0
    %1604 = vmatprep.subr.mxu0 0.0
    %1605 = vmatpush1.msra.mxu0 0.0
    %1606 = vmatprep.subr.mxu0 0.0
    %1607 = vmatpush1.msra.mxu0 0.0
    %1608 = vmatprep.subr.mxu0 0.0
    %1609 = vmatpush1.msra.mxu0 0.0
    %1610 = vmatprep.subr.mxu0 0.0
    %1611 = vmatpush1.msra.mxu0 0.0
    %1612 = vmatprep.subr.mxu0 0.0
    %1613 = vmatpush1.msra.mxu0 0.0
    %1614 = vmatprep.subr.mxu0 0.0
    %1615 = vmatpush1.msra.mxu0 0.0
    %1616 = vmatprep.subr.mxu0 0.0
    %1617 = vmatpush1.msra.mxu0 0.0
    %1618 = vmatprep.subr.mxu0 0.0
    %1619 = vmatpush1.msra.mxu0 0.0
    %1620 = vmatprep.subr.mxu0 0.0
    %1621 = vmatpush1.msra.mxu0 0.0
    %1622 = vmatprep.subr.mxu0 0.0
    %1623 = vmatpush1.msra.mxu0 0.0
    %1624 = vmatprep.subr.mxu0 0.0
    %1625 = vmatpush1.msra.mxu0 0.0
    %1626 = vmatprep.subr.mxu0 0.0
    %1627 = vmatpush1.msra.mxu0 0.0
    %1628 = vmatprep.subr.mxu0 0.0
    %1629 = vmatpush1.msra.mxu0 0.0
    %1630 = vmatprep.subr.mxu0 0.0
    %1631 = vmatpush1.msra.mxu0 0.0
    %1632 = vmatprep.subr.mxu0 0.0
    %1633 = vmatpush1.msra.mxu0 0.0
    %1634 = vmatprep.subr.mxu0 0.0
    %1635 = vmatpush1.msra.mxu0 0.0
    %1636 = vmatprep.subr.mxu0 0.0
    %1637 = vmatpush1.msra.mxu0 0.0
    %1638 = vmatprep.subr.mxu0 0.0
    %1639 = vmatpush1.msra.mxu0 0.0
    %1640 = vmatprep.subr.mxu0 0.0
    %1641 = vmatpush1.msra.mxu0 0.0
    %1642 = vmatprep.subr.mxu0 0.0
    %1643 = vmatpush1.msra.mxu0 0.0
    %1644 = vmatprep.subr.mxu0 0.0
    %1645 = vmatpush1.msra.mxu0 0.0
    %1646 = vmatprep.subr.mxu0 0.0
    %1647 = vmatpush1.msra.mxu0 0.0
    %1648 = vmatprep.subr.mxu0 0.0
    %1649 = vmatpush1.msra.mxu0 0.0
    %1650 = vmatprep.subr.mxu0 0.0
    %1651 = vmatpush1.msra.mxu0 0.0
    %1652 = vmatprep.subr.mxu0 0.0
    %1653 = vmatpush1.msra.mxu0 0.0
    %1654 = vmatprep.subr.mxu0 0.0
    %1655 = vmatpush1.msra.mxu0 0.0
    %1656 = vmatprep.mubr.f32.mxu0 0.0
    %1657 = vmatmul.mubr.f32.gmra.mrb[0].mxu0 %v1489
    %v1658 = vpop.f32.mrb[0].mxu0
    %v1659 = vadd.f32 0.0, %v1658
    %v1660 = vpop.f32.mrb[0].mxu0
    %1661 = vdwg.mxu0
    %v1663 = vrot.slane %v1659, 6
    %v1665 = vadd.f32 %v192, %v1663
    %v1666 = vxor.u32 %v1665, 2147483648
    %v1667 = vmul.f32 %v1666, 1.442695
    %v1668 = vpow.pop %v1667
    %v1669 = vadd.f32 %v1668, 1.0
    %v1670 = vrcp.pop %v1669
    %v1671 = vmul.f32 1.0, %v1670
    %v1672 = vmul.f32 %v1671, %v63
    %v1673 = vadd.f32 %v1672, %v64
    %v1675 = vrot.slane %v1407, 6
    %v1677 = vmul.f32 %v1673, %v1675
    %1679 = vrot.lane.b32.xlu0 %v1673, 64
    %v1680 = vpop.permute.xlu0 %1679
    %v1682 = vmul.f32 %v1673, %v1680
    %1684 = vrot.lane.b32.xlu0 %v1682, 32
    %v1685 = vpop.permute.xlu0 %1684
    %v1687 = vadd.f32 %v1677, %v1685
    %v1688 = vtanh.pop %v1687
    %1690 = vrot.lane.b32.xlu0 %v1688, 64
    %v1691 = vpop.permute.xlu0 %1690
    %v1693 = vmul.f32 %v1673, %v1691
    %v1694 = vsel %vm195, %v1589, 0
    %1696 = vmatprep.subr.mxu0 0.0
    %1697 = vmatpush1.msra.mxu0 %v87
    %1698 = vmatprep.subr.mxu0 0.0
    %1699 = vmatpush1.msra.mxu0 %v88
    %1700 = vmatprep.subr.mxu0 0.0
    %1701 = vmatpush1.msra.mxu0 %v89
    %1702 = vmatprep.subr.mxu0 0.0
    %1703 = vmatpush1.msra.mxu0 %v90
    %1704 = vmatprep.subr.mxu0 0.0
    %1705 = vmatpush1.msra.mxu0 0.0
    %1706 = vmatprep.subr.mxu0 0.0
    %1707 = vmatpush1.msra.mxu0 0.0
    %1708 = vmatprep.subr.mxu0 0.0
    %1709 = vmatpush1.msra.mxu0 0.0
    %1710 = vmatprep.subr.mxu0 0.0
    %1711 = vmatpush1.msra.mxu0 0.0
    %1712 = vmatprep.subr.mxu0 0.0
    %1713 = vmatpush1.msra.mxu0 0.0
    %1714 = vmatprep.subr.mxu0 0.0
    %1715 = vmatpush1.msra.mxu0 0.0
    %1716 = vmatprep.subr.mxu0 0.0
    %1717 = vmatpush1.msra.mxu0 0.0
    %1718 = vmatprep.subr.mxu0 0.0
    %1719 = vmatpush1.msra.mxu0 0.0
    %1720 = vmatprep.subr.mxu0 0.0
    %1721 = vmatpush1.msra.mxu0 0.0
    %1722 = vmatprep.subr.mxu0 0.0
    %1723 = vmatpush1.msra.mxu0 0.0
    %1724 = vmatprep.subr.mxu0 0.0
    %1725 = vmatpush1.msra.mxu0 0.0
    %1726 = vmatprep.subr.mxu0 0.0
    %1727 = vmatpush1.msra.mxu0 0.0
    %1728 = vmatprep.subr.mxu0 0.0
    %1729 = vmatpush1.msra.mxu0 0.0
    %1730 = vmatprep.subr.mxu0 0.0
    %1731 = vmatpush1.msra.mxu0 0.0
    %1732 = vmatprep.subr.mxu0 0.0
    %1733 = vmatpush1.msra.mxu0 0.0
    %1734 = vmatprep.subr.mxu0 0.0
    %1735 = vmatpush1.msra.mxu0 0.0
    %1736 = vmatprep.subr.mxu0 0.0
    %1737 = vmatpush1.msra.mxu0 0.0
    %1738 = vmatprep.subr.mxu0 0.0
    %1739 = vmatpush1.msra.mxu0 0.0
    %1740 = vmatprep.subr.mxu0 0.0
    %1741 = vmatpush1.msra.mxu0 0.0
    %1742 = vmatprep.subr.mxu0 0.0
    %1743 = vmatpush1.msra.mxu0 0.0
    %1744 = vmatprep.subr.mxu0 0.0
    %1745 = vmatpush1.msra.mxu0 0.0
    %1746 = vmatprep.subr.mxu0 0.0
    %1747 = vmatpush1.msra.mxu0 0.0
    %1748 = vmatprep.subr.mxu0 0.0
    %1749 = vmatpush1.msra.mxu0 0.0
    %1750 = vmatprep.subr.mxu0 0.0
    %1751 = vmatpush1.msra.mxu0 0.0
    %1752 = vmatprep.subr.mxu0 0.0
    %1753 = vmatpush1.msra.mxu0 0.0
    %1754 = vmatprep.subr.mxu0 0.0
    %1755 = vmatpush1.msra.mxu0 0.0
    %1756 = vmatprep.subr.mxu0 0.0
    %1757 = vmatpush1.msra.mxu0 0.0
    %1758 = vmatprep.subr.mxu0 0.0
    %1759 = vmatpush1.msra.mxu0 0.0
    %1760 = vmatprep.mubr.f32.mxu0 0.0
    %1761 = vmatmul.mubr.f32.gmra.mrb[0].mxu0 %v1694
    %v1762 = vpop.f32.mrb[0].mxu0
    %v1763 = vadd.f32 0.0, %v1762
    %v1764 = vpop.f32.mrb[0].mxu0
    %1765 = vdwg.mxu0
    %v1767 = vrot.slane %v1693, 2
    %1768 = vrot.lane.b32.xlu0 %v1767, 32
    %v1769 = vpop.permute.xlu0 %1768
    %v1770 = vsel %vm195, %v1769, 0
    %1772 = vmatprep.subr.mxu0 0.0
    %1773 = vmatpush1.msra.mxu0 %v71
    %1774 = vmatprep.subr.mxu0 0.0
    %1775 = vmatpush1.msra.mxu0 %v72
    %1776 = vmatprep.subr.mxu0 0.0
    %1777 = vmatpush1.msra.mxu0 %v73
    %1778 = vmatprep.subr.mxu0 0.0
    %1779 = vmatpush1.msra.mxu0 %v74
    %1780 = vmatprep.subr.mxu0 0.0
    %1781 = vmatpush1.msra.mxu0 0.0
    %1782 = vmatprep.subr.mxu0 0.0
    %1783 = vmatpush1.msra.mxu0 0.0
    %1784 = vmatprep.subr.mxu0 0.0
    %1785 = vmatpush1.msra.mxu0 0.0
    %1786 = vmatprep.subr.mxu0 0.0
    %1787 = vmatpush1.msra.mxu0 0.0
    %1788 = vmatprep.subr.mxu0 0.0
    %1789 = vmatpush1.msra.mxu0 0.0
    %1790 = vmatprep.subr.mxu0 0.0
    %1791 = vmatpush1.msra.mxu0 0.0
    %1792 = vmatprep.subr.mxu0 0.0
    %1793 = vmatpush1.msra.mxu0 0.0
    %1794 = vmatprep.subr.mxu0 0.0
    %1795 = vmatpush1.msra.mxu0 0.0
    %1796 = vmatprep.subr.mxu0 0.0
    %1797 = vmatpush1.msra.mxu0 0.0
    %1798 = vmatprep.subr.mxu0 0.0
    %1799 = vmatpush1.msra.mxu0 0.0
    %1800 = vmatprep.subr.mxu0 0.0
    %1801 = vmatpush1.msra.mxu0 0.0
    %1802 = vmatprep.subr.mxu0 0.0
    %1803 = vmatpush1.msra.mxu0 0.0
    %1804 = vmatprep.subr.mxu0 0.0
    %1805 = vmatpush1.msra.mxu0 0.0
    %1806 = vmatprep.subr.mxu0 0.0
    %1807 = vmatpush1.msra.mxu0 0.0
    %1808 = vmatprep.subr.mxu0 0.0
    %1809 = vmatpush1.msra.mxu0 0.0
    %1810 = vmatprep.subr.mxu0 0.0
    %1811 = vmatpush1.msra.mxu0 0.0
    %1812 = vmatprep.subr.mxu0 0.0
    %1813 = vmatpush1.msra.mxu0 0.0
    %1814 = vmatprep.subr.mxu0 0.0
    %1815 = vmatpush1.msra.mxu0 0.0
    %1816 = vmatprep.subr.mxu0 0.0
    %1817 = vmatpush1.msra.mxu0 0.0
    %1818 = vmatprep.subr.mxu0 0.0
    %1819 = vmatpush1.msra.mxu0 0.0
    %1820 = vmatprep.subr.mxu0 0.0
    %1821 = vmatpush1.msra.mxu0 0.0
    %1822 = vmatprep.subr.mxu0 0.0
    %1823 = vmatpush1.msra.mxu0 0.0
    %1824 = vmatprep.subr.mxu0 0.0
    %1825 = vmatpush1.msra.mxu0 0.0
    %1826 = vmatprep.subr.mxu0 0.0
    %1827 = vmatpush1.msra.mxu0 0.0
    %1828 = vmatprep.subr.mxu0 0.0
    %1829 = vmatpush1.msra.mxu0 0.0
    %1830 = vmatprep.subr.mxu0 0.0
    %1831 = vmatpush1.msra.mxu0 0.0
    %1832 = vmatprep.subr.mxu0 0.0
    %1833 = vmatpush1.msra.mxu0 0.0
    %1834 = vmatprep.subr.mxu0 0.0
    %1835 = vmatpush1.msra.mxu0 0.0
    %1836 = vmatprep.mubr.f32.mxu0 0.0
    %1837 = vmatmul.mubr.f32.gmra.mrb[0].mxu0 %v1770
    %v1838 = vpop.f32.mrb[0].mxu0
    %v1839 = vadd.f32 %v1763, %v1838
    %v1840 = vpop.f32.mrb[0].mxu0
    %1841 = vdwg.mxu0
    %v1842 = vadd.f32 %v1839, %v99
    %v1843 = vxor.u32 %v1842, 2147483648
    %v1844 = vmul.f32 %v1843, 1.442695
    %v1845 = vpow.pop %v1844
    %v1846 = vadd.f32 %v1845, 1.0
    %v1847 = vrcp.pop %v1846
    %v1848 = vmul.f32 1.0, %v1847
    %v1849 = vmul.f32 %v1848, %v63
    %v1850 = vadd.f32 %v1849, %v64
    %v1851 = vmul.f32 %v1850, %v1580
    %1853 = vrot.lane.b32.xlu0 %v1850, 64
    %v1854 = vpop.permute.xlu0 %1853
    %v1856 = vmul.f32 %v1850, %v1854
    %1858 = vrot.lane.b32.xlu0 %v1856, 32
    %v1859 = vpop.permute.xlu0 %1858
    %v1861 = vadd.f32 %v1851, %v1859
    %v1862 = vtanh.pop %v1861
    %1864 = vrot.lane.b32.xlu0 %v1862, 64
    %v1865 = vpop.permute.xlu0 %1864
    %v1867 = vmul.f32 %v1850, %v1865
    %1869 = vrot.lane.b32.xlu0 %v1867, 32
    %v1870 = vpop.permute.xlu0 %1869
    %1872 = vst.msk [vmem:[#allocation2 + $0xa] sm:$0x3] %vm470, %v1870
    %1873 = vmatprep.subr.mxu0 0.0
    %1874 = vmatpush1.msra.mxu0 %v79
    %1875 = vmatprep.subr.mxu0 0.0
    %1876 = vmatpush1.msra.mxu0 %v80
    %1877 = vmatprep.subr.mxu0 0.0
    %1878 = vmatpush1.msra.mxu0 %v81
    %1879 = vmatprep.subr.mxu0 0.0
    %1880 = vmatpush1.msra.mxu0 %v82
    %1881 = vmatprep.subr.mxu0 0.0
    %1882 = vmatpush1.msra.mxu0 0.0
    %1883 = vmatprep.subr.mxu0 0.0
    %1884 = vmatpush1.msra.mxu0 0.0
    %1885 = vmatprep.subr.mxu0 0.0
    %1886 = vmatpush1.msra.mxu0 0.0
    %1887 = vmatprep.subr.mxu0 0.0
    %1888 = vmatpush1.msra.mxu0 0.0
    %1889 = vmatprep.subr.mxu0 0.0
    %1890 = vmatpush1.msra.mxu0 0.0
    %1891 = vmatprep.subr.mxu0 0.0
    %1892 = vmatpush1.msra.mxu0 0.0
    %1893 = vmatprep.subr.mxu0 0.0
    %1894 = vmatpush1.msra.mxu0 0.0
    %1895 = vmatprep.subr.mxu0 0.0
    %1896 = vmatpush1.msra.mxu0 0.0
    %1897 = vmatprep.subr.mxu0 0.0
    %1898 = vmatpush1.msra.mxu0 0.0
    %1899 = vmatprep.subr.mxu0 0.0
    %1900 = vmatpush1.msra.mxu0 0.0
    %1901 = vmatprep.subr.mxu0 0.0
    %1902 = vmatpush1.msra.mxu0 0.0
    %1903 = vmatprep.subr.mxu0 0.0
    %1904 = vmatpush1.msra.mxu0 0.0
    %1905 = vmatprep.subr.mxu0 0.0
    %1906 = vmatpush1.msra.mxu0 0.0
    %1907 = vmatprep.subr.mxu0 0.0
    %1908 = vmatpush1.msra.mxu0 0.0
    %1909 = vmatprep.subr.mxu0 0.0
    %1910 = vmatpush1.msra.mxu0 0.0
    %1911 = vmatprep.subr.mxu0 0.0
    %1912 = vmatpush1.msra.mxu0 0.0
    %1913 = vmatprep.subr.mxu0 0.0
    %1914 = vmatpush1.msra.mxu0 0.0
    %1915 = vmatprep.subr.mxu0 0.0
    %1916 = vmatpush1.msra.mxu0 0.0
    %1917 = vmatprep.subr.mxu0 0.0
    %1918 = vmatpush1.msra.mxu0 0.0
    %1919 = vmatprep.subr.mxu0 0.0
    %1920 = vmatpush1.msra.mxu0 0.0
    %1921 = vmatprep.subr.mxu0 0.0
    %1922 = vmatpush1.msra.mxu0 0.0
    %1923 = vmatprep.subr.mxu0 0.0
    %1924 = vmatpush1.msra.mxu0 0.0
    %1925 = vmatprep.subr.mxu0 0.0
    %1926 = vmatpush1.msra.mxu0 0.0
    %1927 = vmatprep.subr.mxu0 0.0
    %1928 = vmatpush1.msra.mxu0 0.0
    %1929 = vmatprep.subr.mxu0 0.0
    %1930 = vmatpush1.msra.mxu0 0.0
    %1931 = vmatprep.subr.mxu0 0.0
    %1932 = vmatpush1.msra.mxu0 0.0
    %1933 = vmatprep.subr.mxu0 0.0
    %1934 = vmatpush1.msra.mxu0 0.0
    %1935 = vmatprep.subr.mxu0 0.0
    %1936 = vmatpush1.msra.mxu0 0.0
    %1937 = vmatprep.mubr.f32.mxu0 0.0
    %1938 = vmatmul.mubr.f32.gmra.mrb[0].mxu0 %v1770
    %v1939 = vpop.f32.mrb[0].mxu0
    %v1940 = vadd.f32 0.0, %v1939
    %v1941 = vpop.f32.mrb[0].mxu0
    %1942 = vdwg.mxu0
    %v1944 = vrot.slane %v1940, 4
    %v1946 = vadd.f32 %v192, %v1944
    %v1947 = vxor.u32 %v1946, 2147483648
    %v1948 = vmul.f32 %v1947, 1.442695
    %v1949 = vpow.pop %v1948
    %v1950 = vadd.f32 %v1949, 1.0
    %v1951 = vrcp.pop %v1950
    %v1952 = vmul.f32 1.0, %v1951
    %v1953 = vmul.f32 %v1952, %v63
    %v1954 = vadd.f32 %v1953, %v64
    %v1956 = vrot.slane %v1687, 6
    %v1958 = vmul.f32 %v1954, %v1956
    %1960 = vrot.lane.b32.xlu0 %v1954, 64
    %v1961 = vpop.permute.xlu0 %1960
    %v1963 = vmul.f32 %v1954, %v1961
    %1965 = vrot.lane.b32.xlu0 %v1963, 32
    %v1966 = vpop.permute.xlu0 %1965
    %v1968 = vadd.f32 %v1958, %v1966
    %v1969 = vtanh.pop %v1968
    %1971 = vrot.lane.b32.xlu0 %v1969, 64
    %v1972 = vpop.permute.xlu0 %1971
    %v1974 = vmul.f32 %v1954, %v1972
    %v1975 = vsel %vm195, %v1870, 0
    %1977 = vmatprep.subr.mxu0 0.0
    %1978 = vmatpush1.msra.mxu0 %v87
    %1979 = vmatprep.subr.mxu0 0.0
    %1980 = vmatpush1.msra.mxu0 %v88
    %1981 = vmatprep.subr.mxu0 0.0
    %1982 = vmatpush1.msra.mxu0 %v89
    %1983 = vmatprep.subr.mxu0 0.0
    %1984 = vmatpush1.msra.mxu0 %v90
    %1985 = vmatprep.subr.mxu0 0.0
    %1986 = vmatpush1.msra.mxu0 0.0
    %1987 = vmatprep.subr.mxu0 0.0
    %1988 = vmatpush1.msra.mxu0 0.0
    %1989 = vmatprep.subr.mxu0 0.0
    %1990 = vmatpush1.msra.mxu0 0.0
    %1991 = vmatprep.subr.mxu0 0.0
    %1992 = vmatpush1.msra.mxu0 0.0
    %1993 = vmatprep.subr.mxu0 0.0
    %1994 = vmatpush1.msra.mxu0 0.0
    %1995 = vmatprep.subr.mxu0 0.0
    %1996 = vmatpush1.msra.mxu0 0.0
    %1997 = vmatprep.subr.mxu0 0.0
    %1998 = vmatpush1.msra.mxu0 0.0
    %1999 = vmatprep.subr.mxu0 0.0
    %2000 = vmatpush1.msra.mxu0 0.0
    %2001 = vmatprep.subr.mxu0 0.0
    %2002 = vmatpush1.msra.mxu0 0.0
    %2003 = vmatprep.subr.mxu0 0.0
    %2004 = vmatpush1.msra.mxu0 0.0
    %2005 = vmatprep.subr.mxu0 0.0
    %2006 = vmatpush1.msra.mxu0 0.0
    %2007 = vmatprep.subr.mxu0 0.0
    %2008 = vmatpush1.msra.mxu0 0.0
    %2009 = vmatprep.subr.mxu0 0.0
    %2010 = vmatpush1.msra.mxu0 0.0
    %2011 = vmatprep.subr.mxu0 0.0
    %2012 = vmatpush1.msra.mxu0 0.0
    %2013 = vmatprep.subr.mxu0 0.0
    %2014 = vmatpush1.msra.mxu0 0.0
    %2015 = vmatprep.subr.mxu0 0.0
    %2016 = vmatpush1.msra.mxu0 0.0
    %2017 = vmatprep.subr.mxu0 0.0
    %2018 = vmatpush1.msra.mxu0 0.0
    %2019 = vmatprep.subr.mxu0 0.0
    %2020 = vmatpush1.msra.mxu0 0.0
    %2021 = vmatprep.subr.mxu0 0.0
    %2022 = vmatpush1.msra.mxu0 0.0
    %2023 = vmatprep.subr.mxu0 0.0
    %2024 = vmatpush1.msra.mxu0 0.0
    %2025 = vmatprep.subr.mxu0 0.0
    %2026 = vmatpush1.msra.mxu0 0.0
    %2027 = vmatprep.subr.mxu0 0.0
    %2028 = vmatpush1.msra.mxu0 0.0
    %2029 = vmatprep.subr.mxu0 0.0
    %2030 = vmatpush1.msra.mxu0 0.0
    %2031 = vmatprep.subr.mxu0 0.0
    %2032 = vmatpush1.msra.mxu0 0.0
    %2033 = vmatprep.subr.mxu0 0.0
    %2034 = vmatpush1.msra.mxu0 0.0
    %2035 = vmatprep.subr.mxu0 0.0
    %2036 = vmatpush1.msra.mxu0 0.0
    %2037 = vmatprep.subr.mxu0 0.0
    %2038 = vmatpush1.msra.mxu0 0.0
    %2039 = vmatprep.subr.mxu0 0.0
    %2040 = vmatpush1.msra.mxu0 0.0
    %2041 = vmatprep.mubr.f32.mxu0 0.0
    %2042 = vmatmul.mubr.f32.gmra.mrb[0].mxu0 %v1975
    %v2043 = vpop.f32.mrb[0].mxu0
    %v2044 = vadd.f32 0.0, %v2043
    %v2045 = vpop.f32.mrb[0].mxu0
    %2046 = vdwg.mxu0
    %v2048 = vrot.slane %v1974, 4
    %2049 = vrot.lane.b32.xlu0 %v2048, 32
    %v2050 = vpop.permute.xlu0 %2049
    %v2051 = vsel %vm195, %v2050, 0
    %2053 = vmatprep.subr.mxu0 0.0
    %2054 = vmatpush1.msra.mxu0 %v71
    %2055 = vmatprep.subr.mxu0 0.0
    %2056 = vmatpush1.msra.mxu0 %v72
    %2057 = vmatprep.subr.mxu0 0.0
    %2058 = vmatpush1.msra.mxu0 %v73
    %2059 = vmatprep.subr.mxu0 0.0
    %2060 = vmatpush1.msra.mxu0 %v74
    %2061 = vmatprep.subr.mxu0 0.0
    %2062 = vmatpush1.msra.mxu0 0.0
    %2063 = vmatprep.subr.mxu0 0.0
    %2064 = vmatpush1.msra.mxu0 0.0
    %2065 = vmatprep.subr.mxu0 0.0
    %2066 = vmatpush1.msra.mxu0 0.0
    %2067 = vmatprep.subr.mxu0 0.0
    %2068 = vmatpush1.msra.mxu0 0.0
    %2069 = vmatprep.subr.mxu0 0.0
    %2070 = vmatpush1.msra.mxu0 0.0
    %2071 = vmatprep.subr.mxu0 0.0
    %2072 = vmatpush1.msra.mxu0 0.0
    %2073 = vmatprep.subr.mxu0 0.0
    %2074 = vmatpush1.msra.mxu0 0.0
    %2075 = vmatprep.subr.mxu0 0.0
    %2076 = vmatpush1.msra.mxu0 0.0
    %2077 = vmatprep.subr.mxu0 0.0
    %2078 = vmatpush1.msra.mxu0 0.0
    %2079 = vmatprep.subr.mxu0 0.0
    %2080 = vmatpush1.msra.mxu0 0.0
    %2081 = vmatprep.subr.mxu0 0.0
    %2082 = vmatpush1.msra.mxu0 0.0
    %2083 = vmatprep.subr.mxu0 0.0
    %2084 = vmatpush1.msra.mxu0 0.0
    %2085 = vmatprep.subr.mxu0 0.0
    %2086 = vmatpush1.msra.mxu0 0.0
    %2087 = vmatprep.subr.mxu0 0.0
    %2088 = vmatpush1.msra.mxu0 0.0
    %2089 = vmatprep.subr.mxu0 0.0
    %2090 = vmatpush1.msra.mxu0 0.0
    %2091 = vmatprep.subr.mxu0 0.0
    %2092 = vmatpush1.msra.mxu0 0.0
    %2093 = vmatprep.subr.mxu0 0.0
    %2094 = vmatpush1.msra.mxu0 0.0
    %2095 = vmatprep.subr.mxu0 0.0
    %2096 = vmatpush1.msra.mxu0 0.0
    %2097 = vmatprep.subr.mxu0 0.0
    %2098 = vmatpush1.msra.mxu0 0.0
    %2099 = vmatprep.subr.mxu0 0.0
    %2100 = vmatpush1.msra.mxu0 0.0
    %2101 = vmatprep.subr.mxu0 0.0
    %2102 = vmatpush1.msra.mxu0 0.0
    %2103 = vmatprep.subr.mxu0 0.0
    %2104 = vmatpush1.msra.mxu0 0.0
    %2105 = vmatprep.subr.mxu0 0.0
    %2106 = vmatpush1.msra.mxu0 0.0
    %2107 = vmatprep.subr.mxu0 0.0
    %2108 = vmatpush1.msra.mxu0 0.0
    %2109 = vmatprep.subr.mxu0 0.0
    %2110 = vmatpush1.msra.mxu0 0.0
    %2111 = vmatprep.subr.mxu0 0.0
    %2112 = vmatpush1.msra.mxu0 0.0
    %2113 = vmatprep.subr.mxu0 0.0
    %2114 = vmatpush1.msra.mxu0 0.0
    %2115 = vmatprep.subr.mxu0 0.0
    %2116 = vmatpush1.msra.mxu0 0.0
    %2117 = vmatprep.mubr.f32.mxu0 0.0
    %2118 = vmatmul.mubr.f32.gmra.mrb[0].mxu0 %v2051
    %v2119 = vpop.f32.mrb[0].mxu0
    %v2120 = vadd.f32 %v2044, %v2119
    %v2121 = vpop.f32.mrb[0].mxu0
    %2122 = vdwg.mxu0
    %v2123 = vadd.f32 %v2120, %v99
    %v2124 = vxor.u32 %v2123, 2147483648
    %v2125 = vmul.f32 %v2124, 1.442695
    %v2126 = vpow.pop %v2125
    %v2127 = vadd.f32 %v2126, 1.0
    %v2128 = vrcp.pop %v2127
    %v2129 = vmul.f32 1.0, %v2128
    %v2130 = vmul.f32 %v2129, %v63
    %v2131 = vadd.f32 %v2130, %v64
    %v2132 = vmul.f32 %v2131, %v1861
    %2134 = vrot.lane.b32.xlu0 %v2131, 64
    %v2135 = vpop.permute.xlu0 %2134
    %v2137 = vmul.f32 %v2131, %v2135
    %2139 = vrot.lane.b32.xlu0 %v2137, 32
    %v2140 = vpop.permute.xlu0 %2139
    %v2142 = vadd.f32 %v2132, %v2140
    %v2143 = vtanh.pop %v2142
    %2145 = vrot.lane.b32.xlu0 %v2143, 64
    %v2146 = vpop.permute.xlu0 %2145
    %v2148 = vmul.f32 %v2131, %v2146
    %2150 = vrot.lane.b32.xlu0 %v2148, 32
    %v2151 = vpop.permute.xlu0 %2150
    %2153 = vst.msk [vmem:[#allocation2 + $0xc] sm:$0x3] %vm470, %v2151
    %2154 = vmatprep.subr.mxu0 0.0
    %2155 = vmatpush1.msra.mxu0 %v79
    %2156 = vmatprep.subr.mxu0 0.0
    %2157 = vmatpush1.msra.mxu0 %v80
    %2158 = vmatprep.subr.mxu0 0.0
    %2159 = vmatpush1.msra.mxu0 %v81
    %2160 = vmatprep.subr.mxu0 0.0
    %2161 = vmatpush1.msra.mxu0 %v82
    %2162 = vmatprep.subr.mxu0 0.0
    %2163 = vmatpush1.msra.mxu0 0.0
    %2164 = vmatprep.subr.mxu0 0.0
    %2165 = vmatpush1.msra.mxu0 0.0
    %2166 = vmatprep.subr.mxu0 0.0
    %2167 = vmatpush1.msra.mxu0 0.0
    %2168 = vmatprep.subr.mxu0 0.0
    %2169 = vmatpush1.msra.mxu0 0.0
    %2170 = vmatprep.subr.mxu0 0.0
    %2171 = vmatpush1.msra.mxu0 0.0
    %2172 = vmatprep.subr.mxu0 0.0
    %2173 = vmatpush1.msra.mxu0 0.0
    %2174 = vmatprep.subr.mxu0 0.0
    %2175 = vmatpush1.msra.mxu0 0.0
    %2176 = vmatprep.subr.mxu0 0.0
    %2177 = vmatpush1.msra.mxu0 0.0
    %2178 = vmatprep.subr.mxu0 0.0
    %2179 = vmatpush1.msra.mxu0 0.0
    %2180 = vmatprep.subr.mxu0 0.0
    %2181 = vmatpush1.msra.mxu0 0.0
    %2182 = vmatprep.subr.mxu0 0.0
    %2183 = vmatpush1.msra.mxu0 0.0
    %2184 = vmatprep.subr.mxu0 0.0
    %2185 = vmatpush1.msra.mxu0 0.0
    %2186 = vmatprep.subr.mxu0 0.0
    %2187 = vmatpush1.msra.mxu0 0.0
    %2188 = vmatprep.subr.mxu0 0.0
    %2189 = vmatpush1.msra.mxu0 0.0
    %2190 = vmatprep.subr.mxu0 0.0
    %2191 = vmatpush1.msra.mxu0 0.0
    %2192 = vmatprep.subr.mxu0 0.0
    %2193 = vmatpush1.msra.mxu0 0.0
    %2194 = vmatprep.subr.mxu0 0.0
    %2195 = vmatpush1.msra.mxu0 0.0
    %2196 = vmatprep.subr.mxu0 0.0
    %2197 = vmatpush1.msra.mxu0 0.0
    %2198 = vmatprep.subr.mxu0 0.0
    %2199 = vmatpush1.msra.mxu0 0.0
    %2200 = vmatprep.subr.mxu0 0.0
    %2201 = vmatpush1.msra.mxu0 0.0
    %2202 = vmatprep.subr.mxu0 0.0
    %2203 = vmatpush1.msra.mxu0 0.0
    %2204 = vmatprep.subr.mxu0 0.0
    %2205 = vmatpush1.msra.mxu0 0.0
    %2206 = vmatprep.subr.mxu0 0.0
    %2207 = vmatpush1.msra.mxu0 0.0
    %2208 = vmatprep.subr.mxu0 0.0
    %2209 = vmatpush1.msra.mxu0 0.0
    %2210 = vmatprep.subr.mxu0 0.0
    %2211 = vmatpush1.msra.mxu0 0.0
    %2212 = vmatprep.subr.mxu0 0.0
    %2213 = vmatpush1.msra.mxu0 0.0
    %2214 = vmatprep.subr.mxu0 0.0
    %2215 = vmatpush1.msra.mxu0 0.0
    %2216 = vmatprep.subr.mxu0 0.0
    %2217 = vmatpush1.msra.mxu0 0.0
    %2218 = vmatprep.mubr.f32.mxu0 0.0
    %2219 = vmatmul.mubr.f32.gmra.mrb[0].mxu0 %v2051
    %v2220 = vpop.f32.mrb[0].mxu0
    %v2221 = vadd.f32 0.0, %v2220
    %v2222 = vpop.f32.mrb[0].mxu0
    %2223 = vdwg.mxu0
    %v2225 = vrot.slane %v2221, 2
    %v2227 = vadd.f32 %v192, %v2225
    %v2228 = vxor.u32 %v2227, 2147483648
    %v2229 = vmul.f32 %v2228, 1.442695
    %v2230 = vpow.pop %v2229
    %v2231 = vadd.f32 %v2230, 1.0
    %v2232 = vrcp.pop %v2231
    %v2233 = vmul.f32 1.0, %v2232
    %v2234 = vmul.f32 %v2233, %v63
    %v2235 = vadd.f32 %v2234, %v64
    %v2237 = vrot.slane %v1968, 6
    %v2239 = vmul.f32 %v2235, %v2237
    %2241 = vrot.lane.b32.xlu0 %v2235, 64
    %v2242 = vpop.permute.xlu0 %2241
    %v2244 = vmul.f32 %v2235, %v2242
    %2246 = vrot.lane.b32.xlu0 %v2244, 32
    %v2247 = vpop.permute.xlu0 %2246
    %v2249 = vadd.f32 %v2239, %v2247
    %v2250 = vtanh.pop %v2249
    %2252 = vrot.lane.b32.xlu0 %v2250, 64
    %v2253 = vpop.permute.xlu0 %2252
    %v2255 = vmul.f32 %v2235, %v2253
    %v2256 = vsel %vm195, %v2151, 0
    %2258 = vmatprep.subr.mxu0 0.0
    %2259 = vmatpush1.msra.mxu0 %v87
    %2260 = vmatprep.subr.mxu0 0.0
    %2261 = vmatpush1.msra.mxu0 %v88
    %2262 = vmatprep.subr.mxu0 0.0
    %2263 = vmatpush1.msra.mxu0 %v89
    %2264 = vmatprep.subr.mxu0 0.0
    %2265 = vmatpush1.msra.mxu0 %v90
    %2266 = vmatprep.subr.mxu0 0.0
    %2267 = vmatpush1.msra.mxu0 0.0
    %2268 = vmatprep.subr.mxu0 0.0
    %2269 = vmatpush1.msra.mxu0 0.0
    %2270 = vmatprep.subr.mxu0 0.0
    %2271 = vmatpush1.msra.mxu0 0.0
    %2272 = vmatprep.subr.mxu0 0.0
    %2273 = vmatpush1.msra.mxu0 0.0
    %2274 = vmatprep.subr.mxu0 0.0
    %2275 = vmatpush1.msra.mxu0 0.0
    %2276 = vmatprep.subr.mxu0 0.0
    %2277 = vmatpush1.msra.mxu0 0.0
    %2278 = vmatprep.subr.mxu0 0.0
    %2279 = vmatpush1.msra.mxu0 0.0
    %2280 = vmatprep.subr.mxu0 0.0
    %2281 = vmatpush1.msra.mxu0 0.0
    %2282 = vmatprep.subr.mxu0 0.0
    %2283 = vmatpush1.msra.mxu0 0.0
    %2284 = vmatprep.subr.mxu0 0.0
    %2285 = vmatpush1.msra.mxu0 0.0
    %2286 = vmatprep.subr.mxu0 0.0
    %2287 = vmatpush1.msra.mxu0 0.0
    %2288 = vmatprep.subr.mxu0 0.0
    %2289 = vmatpush1.msra.mxu0 0.0
    %2290 = vmatprep.subr.mxu0 0.0
    %2291 = vmatpush1.msra.mxu0 0.0
    %2292 = vmatprep.subr.mxu0 0.0
    %2293 = vmatpush1.msra.mxu0 0.0
    %2294 = vmatprep.subr.mxu0 0.0
    %2295 = vmatpush1.msra.mxu0 0.0
    %2296 = vmatprep.subr.mxu0 0.0
    %2297 = vmatpush1.msra.mxu0 0.0
    %2298 = vmatprep.subr.mxu0 0.0
    %2299 = vmatpush1.msra.mxu0 0.0
    %2300 = vmatprep.subr.mxu0 0.0
    %2301 = vmatpush1.msra.mxu0 0.0
    %2302 = vmatprep.subr.mxu0 0.0
    %2303 = vmatpush1.msra.mxu0 0.0
    %2304 = vmatprep.subr.mxu0 0.0
    %2305 = vmatpush1.msra.mxu0 0.0
    %2306 = vmatprep.subr.mxu0 0.0
    %2307 = vmatpush1.msra.mxu0 0.0
    %2308 = vmatprep.subr.mxu0 0.0
    %2309 = vmatpush1.msra.mxu0 0.0
    %2310 = vmatprep.subr.mxu0 0.0
    %2311 = vmatpush1.msra.mxu0 0.0
    %2312 = vmatprep.subr.mxu0 0.0
    %2313 = vmatpush1.msra.mxu0 0.0
    %2314 = vmatprep.subr.mxu0 0.0
    %2315 = vmatpush1.msra.mxu0 0.0
    %2316 = vmatprep.subr.mxu0 0.0
    %2317 = vmatpush1.msra.mxu0 0.0
    %2318 = vmatprep.subr.mxu0 0.0
    %2319 = vmatpush1.msra.mxu0 0.0
    %2320 = vmatprep.subr.mxu0 0.0
    %2321 = vmatpush1.msra.mxu0 0.0
    %2322 = vmatprep.mubr.f32.mxu0 0.0
    %2323 = vmatmul.mubr.f32.gmra.mrb[0].mxu0 %v2256
    %v2324 = vpop.f32.mrb[0].mxu0
    %v2325 = vadd.f32 0.0, %v2324
    %v2326 = vpop.f32.mrb[0].mxu0
    %2327 = vdwg.mxu0
    %v2329 = vrot.slane %v2255, 6
    %2330 = vrot.lane.b32.xlu0 %v2329, 32
    %v2331 = vpop.permute.xlu0 %2330
    %v2332 = vsel %vm195, %v2331, 0
    %2334 = vmatprep.subr.mxu0 0.0
    %2335 = vmatpush1.msra.mxu0 %v71
    %2336 = vmatprep.subr.mxu0 0.0
    %2337 = vmatpush1.msra.mxu0 %v72
    %2338 = vmatprep.subr.mxu0 0.0
    %2339 = vmatpush1.msra.mxu0 %v73
    %2340 = vmatprep.subr.mxu0 0.0
    %2341 = vmatpush1.msra.mxu0 %v74
    %2342 = vmatprep.subr.mxu0 0.0
    %2343 = vmatpush1.msra.mxu0 0.0
    %2344 = vmatprep.subr.mxu0 0.0
    %2345 = vmatpush1.msra.mxu0 0.0
    %2346 = vmatprep.subr.mxu0 0.0
    %2347 = vmatpush1.msra.mxu0 0.0
    %2348 = vmatprep.subr.mxu0 0.0
    %2349 = vmatpush1.msra.mxu0 0.0
    %2350 = vmatprep.subr.mxu0 0.0
    %2351 = vmatpush1.msra.mxu0 0.0
    %2352 = vmatprep.subr.mxu0 0.0
    %2353 = vmatpush1.msra.mxu0 0.0
    %2354 = vmatprep.subr.mxu0 0.0
    %2355 = vmatpush1.msra.mxu0 0.0
    %2356 = vmatprep.subr.mxu0 0.0
    %2357 = vmatpush1.msra.mxu0 0.0
    %2358 = vmatprep.subr.mxu0 0.0
    %2359 = vmatpush1.msra.mxu0 0.0
    %2360 = vmatprep.subr.mxu0 0.0
    %2361 = vmatpush1.msra.mxu0 0.0
    %2362 = vmatprep.subr.mxu0 0.0
    %2363 = vmatpush1.msra.mxu0 0.0
    %2364 = vmatprep.subr.mxu0 0.0
    %2365 = vmatpush1.msra.mxu0 0.0
    %2366 = vmatprep.subr.mxu0 0.0
    %2367 = vmatpush1.msra.mxu0 0.0
    %2368 = vmatprep.subr.mxu0 0.0
    %2369 = vmatpush1.msra.mxu0 0.0
    %2370 = vmatprep.subr.mxu0 0.0
    %2371 = vmatpush1.msra.mxu0 0.0
    %2372 = vmatprep.subr.mxu0 0.0
    %2373 = vmatpush1.msra.mxu0 0.0
    %2374 = vmatprep.subr.mxu0 0.0
    %2375 = vmatpush1.msra.mxu0 0.0
    %2376 = vmatprep.subr.mxu0 0.0
    %2377 = vmatpush1.msra.mxu0 0.0
    %2378 = vmatprep.subr.mxu0 0.0
    %2379 = vmatpush1.msra.mxu0 0.0
    %2380 = vmatprep.subr.mxu0 0.0
    %2381 = vmatpush1.msra.mxu0 0.0
    %2382 = vmatprep.subr.mxu0 0.0
    %2383 = vmatpush1.msra.mxu0 0.0
    %2384 = vmatprep.subr.mxu0 0.0
    %2385 = vmatpush1.msra.mxu0 0.0
    %2386 = vmatprep.subr.mxu0 0.0
    %2387 = vmatpush1.msra.mxu0 0.0
    %2388 = vmatprep.subr.mxu0 0.0
    %2389 = vmatpush1.msra.mxu0 0.0
    %2390 = vmatprep.subr.mxu0 0.0
    %2391 = vmatpush1.msra.mxu0 0.0
    %2392 = vmatprep.subr.mxu0 0.0
    %2393 = vmatpush1.msra.mxu0 0.0
    %2394 = vmatprep.subr.mxu0 0.0
    %2395 = vmatpush1.msra.mxu0 0.0
    %2396 = vmatprep.subr.mxu0 0.0
    %2397 = vmatpush1.msra.mxu0 0.0
    %2398 = vmatprep.mubr.f32.mxu0 0.0
    %2399 = vmatmul.mubr.f32.gmra.mrb[0].mxu0 %v2332
    %v2400 = vpop.f32.mrb[0].mxu0
    %v2401 = vadd.f32 %v2325, %v2400
    %v2402 = vpop.f32.mrb[0].mxu0
    %2403 = vdwg.mxu0
    %v2404 = vadd.f32 %v2401, %v99
    %v2405 = vxor.u32 %v2404, 2147483648
    %v2406 = vmul.f32 %v2405, 1.442695
    %v2407 = vpow.pop %v2406
    %v2408 = vadd.f32 %v2407, 1.0
    %v2409 = vrcp.pop %v2408
    %v2410 = vmul.f32 1.0, %v2409
    %v2411 = vmul.f32 %v2410, %v63
    %v2412 = vadd.f32 %v2411, %v64
    %v2413 = vmul.f32 %v2412, %v2142
    %2415 = vrot.lane.b32.xlu0 %v2412, 64
    %v2416 = vpop.permute.xlu0 %2415
    %v2418 = vmul.f32 %v2412, %v2416
    %2420 = vrot.lane.b32.xlu0 %v2418, 32
    %v2421 = vpop.permute.xlu0 %2420
    %v2423 = vadd.f32 %v2413, %v2421
    %v2424 = vtanh.pop %v2423
    %2426 = vrot.lane.b32.xlu0 %v2424, 64
    %v2427 = vpop.permute.xlu0 %2426
    %v2429 = vmul.f32 %v2412, %v2427
    %2431 = vrot.lane.b32.xlu0 %v2429, 32
    %v2432 = vpop.permute.xlu0 %2431
    %2434 = vst.msk [vmem:[#allocation2 + $0xe] sm:$0x3] %vm470, %v2432
    %v2435 = vld [vmem:[#allocation2] sm:$0xff]
    %v2436 = vld [vmem:[#allocation2 + $0x8] sm:$0xff]
    %v2437 = vld [vmem:[%s7] sm:$0xff]
    %v2438 = vld [vmem:[%s7 + $0x8] sm:$0xff]
    %v2439 = vld [vmem:[%s7 + $0x10] sm:$0xff]
    %v2440 = vld [vmem:[%s7 + $0x18] sm:$0xff]
    %v2441 = vld [vmem:[#allocation5] sm:$0x1]
    %v2443 = vlaneseq
    %v2444 = vshrl.u32 %v2443, 7
    %v2445 = vsub.s32 0, %v2444
    %v2446 = vrot.slane %v2441, %v2445
    %v2449 = vsel %vm195, %v2435, 0
    %v2452 = vsel %vm195, %v2436, 0
    %2454 = vmatprep.subr.mxu0 0.0
    %2455 = vmatpush1.msra.mxu0 %v2437
    %2456 = vmatprep.subr.mxu0 0.0
    %2457 = vmatpush1.msra.mxu0 %v2438
    %2458 = vmatprep.subr.mxu0 0.0
    %2459 = vmatpush1.msra.mxu0 %v2439
    %2460 = vmatprep.subr.mxu0 0.0
    %2461 = vmatpush1.msra.mxu0 %v2440
    %2462 = vmatprep.subr.mxu0 0.0
    %2463 = vmatpush1.msra.mxu0 0.0
    %2464 = vmatprep.subr.mxu0 0.0
    %2465 = vmatpush1.msra.mxu0 0.0
    %2466 = vmatprep.subr.mxu0 0.0
    %2467 = vmatpush1.msra.mxu0 0.0
    %2468 = vmatprep.subr.mxu0 0.0
    %2469 = vmatpush1.msra.mxu0 0.0
    %2470 = vmatprep.subr.mxu0 0.0
    %2471 = vmatpush1.msra.mxu0 0.0
    %2472 = vmatprep.subr.mxu0 0.0
    %2473 = vmatpush1.msra.mxu0 0.0
    %2474 = vmatprep.subr.mxu0 0.0
    %2475 = vmatpush1.msra.mxu0 0.0
    %2476 = vmatprep.subr.mxu0 0.0
    %2477 = vmatpush1.msra.mxu0 0.0
    %2478 = vmatprep.subr.mxu0 0.0
    %2479 = vmatpush1.msra.mxu0 0.0
    %2480 = vmatprep.subr.mxu0 0.0
    %2481 = vmatpush1.msra.mxu0 0.0
    %2482 = vmatprep.subr.mxu0 0.0
    %2483 = vmatpush1.msra.mxu0 0.0
    %2484 = vmatprep.subr.mxu0 0.0
    %2485 = vmatpush1.msra.mxu0 0.0
    %2486 = vmatprep.subr.mxu0 0.0
    %2487 = vmatpush1.msra.mxu0 0.0
    %2488 = vmatprep.subr.mxu0 0.0
    %2489 = vmatpush1.msra.mxu0 0.0
    %2490 = vmatprep.subr.mxu0 0.0
    %2491 = vmatpush1.msra.mxu0 0.0
    %2492 = vmatprep.subr.mxu0 0.0
    %2493 = vmatpush1.msra.mxu0 0.0
    %2494 = vmatprep.subr.mxu0 0.0
    %2495 = vmatpush1.msra.mxu0 0.0
    %2496 = vmatprep.subr.mxu0 0.0
    %2497 = vmatpush1.msra.mxu0 0.0
    %2498 = vmatprep.subr.mxu0 0.0
    %2499 = vmatpush1.msra.mxu0 0.0
    %2500 = vmatprep.subr.mxu0 0.0
    %2501 = vmatpush1.msra.mxu0 0.0
    %2502 = vmatprep.subr.mxu0 0.0
    %2503 = vmatpush1.msra.mxu0 0.0
    %2504 = vmatprep.subr.mxu0 0.0
    %2505 = vmatpush1.msra.mxu0 0.0
    %2506 = vmatprep.subr.mxu0 0.0
    %2507 = vmatpush1.msra.mxu0 0.0
    %2508 = vmatprep.subr.mxu0 0.0
    %2509 = vmatpush1.msra.mxu0 0.0
    %2510 = vmatprep.subr.mxu0 0.0
    %2511 = vmatpush1.msra.mxu0 0.0
    %2512 = vmatprep.subr.mxu0 0.0
    %2513 = vmatpush1.msra.mxu0 0.0
    %2514 = vmatprep.subr.mxu0 0.0
    %2515 = vmatpush1.msra.mxu0 0.0
    %2516 = vmatprep.subr.mxu0 0.0
    %2517 = vmatpush1.msra.mxu0 0.0
    %2518 = vmatprep.mubr.f32.mxu0 0.0
    %2519 = vmatmul.mubr.f32.gmra.mrb[0].mxu0 %v2449
    %v2520 = vpop.f32.mrb[0].mxu0
    %v2521 = vadd.f32 %v2446, %v2520
    %v2522 = vpop.f32.mrb[0].mxu0
    %2523 = vmatprep.mubr.f32.mxu0 0.0
    %2524 = vmatmul.mubr.f32.gmra.mrb[0].mxu0 %v2452
    %v2525 = vpop.f32.mrb[0].mxu0
    %v2526 = vadd.f32 %v2446, %v2525
    %v2527 = vpop.f32.mrb[0].mxu0
    %2528 = vdwg.mxu0
    %vm2529 = vcmask 23552
    %2530 = vst.msk [vmem:[%s9] sm:$0xff] %vm2529, %v2521
    %2531 = vst.msk [vmem:[%s9 + $0x8] sm:$0xff] %vm2529, %v2526
    // Predicated region
    $region46: #{deepvarwt_forward.1} parent=1 // pred_check
      _
    $region47: #{deepvarwt_forward.1} parent=1 // pred_check_branch
      %2533 = sbr.rel (0) target = $region49
    $region48: #{deepvarwt_forward.1} parent=1 // pred_region
      _
    $region49: #{deepvarwt_forward.1} parent=1 // pred_fallthru
      _
    // Predicated region
    $region50: #{deepvarwt_forward.1} parent=1 // pred_check
      _
    $region51: #{deepvarwt_forward.1} parent=1 // pred_check_branch
      %2535 = sbr.rel (0) target = $region53
    $region52: #{deepvarwt_forward.1} parent=1 // pred_region
      _
    $region53: #{deepvarwt_forward.1} parent=1 // pred_fallthru
      _
    %2536 = vsyncpa [#allocation4], 1
    %2537 = vsyncpa [#allocation6], 1

</llo_original>
